<compile_context>
chip_gen: v7x
topology: tpu7x:2x2x1
jax: 0.10.0
libtpu: 0.0.40
codegen_flags: <defaults>
</compile_context>

<pallas_src>
import numpy as np
import jax
import jax.numpy as jnp
from jax import lax
from jax.experimental import pallas as pl
from jax.experimental.pallas import tpu as pltpu

# ---- Izhikevich constants: IzhNodeMU(threshold=30, a=.02, b=.6, c=-65, d=8, mem=-70) ----
THRESHOLD = 30.0
MEM0 = -70.0
U0 = 0.0
DT = 1.0
_MEM_DRIFT = MEM0 + DT * (0.04 * MEM0 * MEM0 + 5.0 * MEM0 - U0 + 140.0)   # = -84
I_SPIKE = THRESHOLD - _MEM_DRIFT                                          # = 114: spike iff I > 114
LANE = 128


def _round_up(x, m):
    return (x + m - 1) // m * m


def dlpfc_kernel(x_ref, w0_ref, w1_ref, out_ref):
    """One grid step: TB timesteps of the DLPFC -> BG forward pass.

    x_ref:  (TB, N, D_IN)   unpadded inputs for TB timesteps (f32)
    w0_ref: (D_IN, P_H)     output-padded connection[0] weight (bf16, VMEM-resident)
    w1_ref: (P_H, P_OUT)    output-padded connection[1] weight (bf16, VMEM-resident)
    out_ref:(TB, N, P_OUT)  padded BG spike / one-hot output (f32, lane-dense)
    """
    tb, n, d_in = x_ref.shape
    p_out = out_ref.shape[-1]

    # ---- both linear layers on the MXU (bf16 operands, f32 accumulate), TB stacked rows ----
    x2d = x_ref[...].astype(jnp.bfloat16).reshape(tb * n, d_in)
    i0 = jnp.dot(x2d, w0_ref[...], preferred_element_type=jnp.float32)
    spk0 = (i0 > I_SPIKE).astype(jnp.bfloat16)            # Izhikevich single-step spike, {0,1}
    i1 = jnp.dot(spk0, w1_ref[...], preferred_element_type=jnp.float32)
    spiked = (i1 > I_SPIKE).reshape(tb, n, p_out)          # single spike compare, reused below
    spk1 = spiked.astype(jnp.float32)

    # ---- per-timestep epilogue: "if sum(sum(BG_Spike)) > 1 -> one-hot at (first) argmax" ----
    # Sublane axis (1) reduced first, cross-lane (XLU) reduce runs on the (tb, 128) remainder.
    total = spk1.sum(axis=1).sum(axis=-1).reshape(tb, 1, 1)

    row_ids = lax.broadcasted_iota(jnp.int32, (tb, n, p_out), 1)
    col_ids = lax.broadcasted_iota(jnp.int32, (tb, n, p_out), 2)
    # p_out-strided linear index: row-major order on the real (n x d_out) region (padded
    # lanes never spike -> never win the min) and injective over the whole padded tile, so
    # `lin == flat_idx` is a valid one-hot with no row/col decode and no padding collision.
    lin = row_ids * p_out + col_ids
    sentinel = jnp.int32(n * p_out)
    masked = jnp.where(spiked, lin, sentinel)
    flat_idx = masked.min(axis=1).min(axis=-1).reshape(tb, 1, 1)   # first spike, (tb,1,1)
    onehot = (lin == flat_idx).astype(jnp.float32)

    out_ref[...] = jnp.where(total > 1.0, onehot, spk1)


def dlpfc_forward(x, w0, w1, *, tb=None):
    """x: (T, N, D_IN); w0: (D_IN, D_H); w1: (D_H, D_OUT).

    Returns the PADDED output (T, N, round_up(D_OUT, 128)) float32; only [..., :D_OUT] is
    meaningful (slice lazily at the consumer to avoid an extra HBM round trip).
    """
    t, n, d_in = x.shape
    d_in_w, d_h = w0.shape
    d_h_w, d_out = w1.shape
    assert d_in_w == d_in and d_h_w == d_h
    # PyTorch decodes the argmax with num_neuron = number of rows; this only matches the
    # row-major flattening when the BG spike matrix is square.
    assert d_out == n, "BG spike matrix must be square (num_neuron x num_neuron)"
    assert n % 8 == 0, "row count must be a multiple of the 8-sublane tile"

    if tb is None:
        # grid of 2 shards the "parallel" timestep axis across v7x's two TensorCores while
        # staying near-optimal (two fat steps) on single-TC v5e/v6e. Pass tb=t to force 1.
        tb = t // 2 if t % 2 == 0 else t
    tb = min(tb, t)
    assert t % tb == 0, "T must be divisible by the per-step timestep tile"

    # Pad only the weight OUTPUT dims to 128 lanes: lane-dense matmul results / stores, and
    # the padded weight columns are zero so padded neurons never spike. Weights live in HBM
    # as bf16 (half the traffic); {0,1} spikes and bf16-exact weights keep the MXU exact.
    p_h, p_out = _round_up(d_h, LANE), _round_up(d_out, LANE)
    xf = x.astype(jnp.float32)                                        # unpadded activations
    w0b = jnp.pad(w0.astype(jnp.float32), ((0, 0), (0, p_h - d_h))).astype(jnp.bfloat16)
    w1b = jnp.pad(w1.astype(jnp.float32),
                  ((0, p_h - d_h), (0, p_out - d_out))).astype(jnp.bfloat16)

    flops = 2 * t * n * (d_in * p_h + p_h * p_out)
    bytes_accessed = 4 * xf.size + 2 * (w0b.size + w1b.size) + 4 * t * n * p_out

    out_padded = pl.pallas_call(
        dlpfc_kernel,
        out_shape=jax.ShapeDtypeStruct((t, n, p_out), jnp.float32),
        grid=(t // tb,),
        in_specs=[
            pl.BlockSpec((tb, n, d_in), lambda i: (i, 0, 0)),   # activations: new tile per step
            pl.BlockSpec((d_in, p_h), lambda i: (0, 0)),        # weights: VMEM-resident
            pl.BlockSpec((p_h, p_out), lambda i: (0, 0)),       # weights: VMEM-resident
        ],
        out_specs=pl.BlockSpec((tb, n, p_out), lambda i: (i, 0, 0)),
        compiler_params=pltpu.CompilerParams(
            dimension_semantics=("parallel",)),                 # v7x: shard timesteps over TCs
        cost_estimate=pl.CostEstimate(
            flops=flops, transcendentals=0, bytes_accessed=bytes_accessed),
    )(xf, w0b, w1b)
    return out_padded


# ---------------------------- pure-JAX reference ----------------------------
def _izh_spike_ref(i_syn):
    mem = MEM0 + DT * (0.04 * MEM0 * MEM0 + 5.0 * MEM0 - U0 + 140.0 + i_syn)
    return (mem - THRESHOLD > 0.0).astype(jnp.float32)


def dlpfc_reference(x, w0, w1):
    """Per-timestep reference of the PyTorch forward."""
    def one(xt):
        spk0 = _izh_spike_ref(jnp.dot(xt, w0, precision=lax.Precision.HIGHEST))
        spk1 = _izh_spike_ref(jnp.dot(spk0, w1, precision=lax.Precision.HIGHEST))
        n_rows = spk1.shape[0]
        total = jnp.sum(spk1)
        flat_idx = jnp.argmax(spk1)                       # first occurrence, row-major
        idx_x = flat_idx // n_rows
        idx_y = flat_idx - idx_x * n_rows
        onehot = jnp.zeros_like(spk1).at[idx_x, idx_y].set(1.0)
        return jnp.where(total > 1.0, onehot, spk1)

    return jax.vmap(one)(x)


if __name__ == "__main__":
    T = 32        # timesteps batched behind a single pallas_call (grid = 2)
    N = 16        # num_neuron (BG spike matrix is N x N)
    D_IN = 16     # DLPFC input features
    D_H = 32      # DLPFC neurons (connection[0] out / connection[1] in)
    D_OUT = N     # BG neurons (square so the PyTorch argmax decode matches exactly)

    key = jax.random.PRNGKey(0)
    kx, k0, k1 = jax.random.split(key, 3)
    # Integer-valued inputs/weights (exactly representable in bf16 and on every matmul
    # path) so the kernel and reference threshold identical synaptic currents; scaled so
    # the Izhikevich neurons actually spike (spike requires I > 114).
    x = jnp.round(3.0 * jax.random.normal(kx, (T, N, D_IN), dtype=jnp.float32))
    x = x.at[-1].set(0.0)   # one quiet timestep exercises the "<= 1 spike" branch
    w0 = jnp.round(40.0 * jax.random.normal(k0, (D_IN, D_H), dtype=jnp.float32))
    w1 = jnp.round(40.0 * jax.random.normal(k1, (D_H, D_OUT), dtype=jnp.float32))

    out_padded = jax.block_until_ready(dlpfc_forward(x, w0, w1))
    ref = jax.block_until_ready(dlpfc_reference(x, w0, w1))
    out = np.asarray(out_padded)[:, :, :D_OUT]            # consumer-side lazy slice
    np.testing.assert_array_equal(out, np.asarray(ref))

    print("KERNEL_OK")
</pallas_src>

<mosaic_0001>
module attributes {stable_mosaic.version = 11 : i64} {
  func.func @dlpfc_kernel(%arg0: i32, %arg1: memref<16x16x16xf32, #tpu.memory_space<vmem>>, %arg2: memref<16x128xbf16, #tpu.memory_space<vmem>>, %arg3: memref<128x128xbf16, #tpu.memory_space<vmem>>, %arg4: memref<16x16x128xf32, #tpu.memory_space<vmem>>) attributes {dimension_semantics = [#tpu.dimension_semantics<parallel>], iteration_bounds = array<i64: 2>, scalar_prefetch = 0 : i64, scratch_operands = 0 : i64, tpu.core_type = #tpu.core_type<tc>, window_params = [{transform_indices = @transform_0, window_bounds = array<i64: 16, 16, 16>}, {pipeline_mode = #tpu.pipeline_mode<synchronous>, transform_indices = @transform_1, window_bounds = array<i64: 16, 128>}, {pipeline_mode = #tpu.pipeline_mode<synchronous>, transform_indices = @transform_2, window_bounds = array<i64: 128, 128>}, {transform_indices = @transform_3, window_bounds = array<i64: 16, 16, 128>}]} {
    %c0 = arith.constant 0 : index
    %c0_0 = arith.constant 0 : index
    %c0_1 = arith.constant 0 : index
    %0 = vector.load %arg1[%c0, %c0_0, %c0_1] : memref<16x16x16xf32, #tpu.memory_space<vmem>>, vector<16x16x16xf32>
    %1 = arith.truncf %0 : vector<16x16x16xf32> to vector<16x16x16xbf16>
    %2 = vector.shape_cast %1 : vector<16x16x16xbf16> to vector<256x16xbf16>
    %c0_2 = arith.constant 0 : index
    %c0_3 = arith.constant 0 : index
    %3 = vector.load %arg2[%c0_2, %c0_3] : memref<16x128xbf16, #tpu.memory_space<vmem>>, vector<16x128xbf16>
    %cst = arith.constant dense<0.000000e+00> : vector<256x128xf32>
    %4 = tpu.matmul %2, %3, %cst {dimension_numbers = #tpu.dot_dimension_numbers<[1], [0], [0], [1], [0, 0, 1, 1], [], []>} : vector<256x16xbf16>, vector<16x128xbf16>, vector<256x128xf32> -> vector<256x128xf32>
    %cst_4 = arith.constant 1.140000e+02 : f32
    %5 = vector.broadcast %cst_4 : f32 to vector<256x128xf32>
    %6 = arith.cmpf ogt, %4, %5 : vector<256x128xf32>
    %7 = arith.extui %6 : vector<256x128xi1> to vector<256x128xi32>
    %8 = arith.sitofp %7 : vector<256x128xi32> to vector<256x128xf32>
    %9 = arith.truncf %8 : vector<256x128xf32> to vector<256x128xbf16>
    %c0_5 = arith.constant 0 : index
    %c0_6 = arith.constant 0 : index
    %10 = vector.load %arg3[%c0_5, %c0_6] : memref<128x128xbf16, #tpu.memory_space<vmem>>, vector<128x128xbf16>
    %cst_7 = arith.constant dense<0.000000e+00> : vector<256x128xf32>
    %11 = tpu.matmul %9, %10, %cst_7 {dimension_numbers = #tpu.dot_dimension_numbers<[1], [0], [0], [1], [0, 0, 1, 1], [], []>} : vector<256x128xbf16>, vector<128x128xbf16>, vector<256x128xf32> -> vector<256x128xf32>
    %cst_8 = arith.constant 1.140000e+02 : f32
    %12 = vector.broadcast %cst_8 : f32 to vector<256x128xf32>
    %13 = arith.cmpf ogt, %11, %12 : vector<256x128xf32>
    %14 = vector.shape_cast %13 : vector<256x128xi1> to vector<16x16x128xi1>
    %15 = arith.extui %14 : vector<16x16x128xi1> to vector<16x16x128xi32>
    %16 = arith.sitofp %15 : vector<16x16x128xi32> to vector<16x16x128xf32>
    %cst_9 = arith.constant dense<0.000000e+00> : vector<16x128xf32>
    %17 = vector.multi_reduction <add>, %16, %cst_9 [1] : vector<16x16x128xf32> to vector<16x128xf32>
    %cst_10 = arith.constant dense<0.000000e+00> : vector<16xf32>
    %18 = vector.multi_reduction <add>, %17, %cst_10 [1] : vector<16x128xf32> to vector<16xf32>
    %19 = vector.shape_cast %18 : vector<16xf32> to vector<16x1x1xf32>
    %20 = tpu.iota {dimensions = array<i32: 1>} : vector<16x16x128xi32>
    %21 = tpu.iota {dimensions = array<i32: 2>} : vector<16x16x128xi32>
    %c128_i32 = arith.constant 128 : i32
    %22 = vector.broadcast %c128_i32 : i32 to vector<16x16x128xi32>
    %23 = arith.muli %20, %22 : vector<16x16x128xi32>
    %24 = arith.addi %23, %21 : vector<16x16x128xi32>
    %c2048_i32 = arith.constant 2048 : i32
    %25 = vector.broadcast %c2048_i32 : i32 to vector<16x16x128xi32>
    %26 = arith.select %14, %24, %25 : vector<16x16x128xi1>, vector<16x16x128xi32>
    %cst_11 = arith.constant dense<2147483647> : vector<16x128xi32>
    %27 = vector.multi_reduction <minsi>, %26, %cst_11 [1] : vector<16x16x128xi32> to vector<16x128xi32>
    %cst_12 = arith.constant dense<2147483647> : vector<16xi32>
    %28 = vector.multi_reduction <minsi>, %27, %cst_12 [1] : vector<16x128xi32> to vector<16xi32>
    %29 = vector.shape_cast %28 : vector<16xi32> to vector<16x1x1xi32>
    %30 = vector.broadcast %29 : vector<16x1x1xi32> to vector<16x16x128xi32>
    %31 = arith.cmpi eq, %24, %30 : vector<16x16x128xi32>
    %32 = arith.extui %31 : vector<16x16x128xi1> to vector<16x16x128xi32>
    %33 = arith.sitofp %32 : vector<16x16x128xi32> to vector<16x16x128xf32>
    %cst_13 = arith.constant 1.000000e+00 : f32
    %34 = vector.broadcast %cst_13 : f32 to vector<16x1x1xf32>
    %35 = arith.cmpf ogt, %19, %34 : vector<16x1x1xf32>
    %36 = vector.shape_cast %35 : vector<16x1x1xi1> to vector<16x1x1xi1>
    %37 = vector.broadcast %36 : vector<16x1x1xi1> to vector<16x16x128xi1>
    %38 = arith.select %37, %33, %16 : vector<16x16x128xi1>, vector<16x16x128xf32>
    %c0_14 = arith.constant 0 : index
    %c0_15 = arith.constant 0 : index
    %c0_16 = arith.constant 0 : index
    %39 = vector.load %arg4[%c0_14, %c0_15, %c0_16] : memref<16x16x128xf32, #tpu.memory_space<vmem>>, vector<16x16x128xf32>
    tpu.vector_store %arg4[%c0_14, %c0_15, %c0_16], %38 {strides = array<i32>} : memref<16x16x128xf32, #tpu.memory_space<vmem>>, vector<16x16x128xf32>,
    return
  }
  func.func @transform_0(%arg0: i32) -> (i32, i32, i32) {
    %c0_i32 = arith.constant 0 : i32
    %c0_i32_0 = arith.constant 0 : i32
    %c0_i32_1 = arith.constant 0 : i32
    return %arg0, %c0_i32, %c0_i32_0 : i32, i32, i32
  }
  func.func @transform_1(%arg0: i32) -> (i32, i32) {
    %c0_i32 = arith.constant 0 : i32
    %c0_i32_0 = arith.constant 0 : i32
    %c0_i32_1 = arith.constant 0 : i32
    return %c0_i32, %c0_i32_0 : i32, i32
  }
  func.func @transform_2(%arg0: i32) -> (i32, i32) {
    %c0_i32 = arith.constant 0 : i32
    %c0_i32_0 = arith.constant 0 : i32
    %c0_i32_1 = arith.constant 0 : i32
    return %c0_i32, %c0_i32_0 : i32, i32
  }
  func.func @transform_3(%arg0: i32) -> (i32, i32, i32) {
    %c0_i32 = arith.constant 0 : i32
    %c0_i32_0 = arith.constant 0 : i32
    %c0_i32_1 = arith.constant 0 : i32
    return %arg0, %c0_i32, %c0_i32_0 : i32, i32, i32
  }
}

</mosaic_0001>

<llo_original>
// kernel: tpu_custom_call.1
$region0: #{tpu_custom_call.1}
  #allocation0 [shape = 'u32[]', space=smem, size = 0x4, offset = 0x4, fixed_abs, tag = 'smem constant byte address 0x4 - core index']
  #allocation1 [shape = 'u32[144,128]{1,0:T(1,128)}', space=vmem, size = 0x12000, scoped, tag = 'internal scratch']
  %s0 = inlined_call_operand.vmem [shape: f32[32,16,16], index: 0, kind: input, shape index: {}]
  %s1 = inlined_call_operand.vmem [shape: bf16[16,128], index: 1, kind: input, shape index: {}]
  %s2 = inlined_call_operand.vmem [shape: bf16[128,128], index: 2, kind: input, shape index: {}]
  %s3 = inlined_call_operand.hbm [shape: f32[32,16,128], index: 3, kind: output, shape index: {}]
  %s4 = sld [smem:[#allocation0]]
  $region45: #{tpu_custom_call.1} parent=0
    _
  %s6 = ssub.s32 1, %s4
  %s7 = scalar_select 0, %s6, %s4
  $region1: #{tpu_custom_call.1} parent=0
    #allocation2 [shape = 'u8[262144]{0}', space=vmem, size = 0x40000, scoped, tag = 'output window, operand 0']
    #allocation3 [shape = 's32[2]{0}', space=sflag, size = 0x8, scoped, tag = 'scoped memory for tpu_custom_call.1']
    %8 = vsyncpa [#allocation3], 0
    %s9 = scalar_lea.sflag [#allocation3], 1
    %10 = vsyncpa %s9, 0
    loop: start=0, step=1, limit=4
    $region2: #{tpu_custom_call.1} parent=1 // loop_pre_header
      _
    $region3: #{tpu_custom_call.1} parent=1 // loop_header
      %s12 = sphi 0, %s16
      %p13 = scmp.ge.s32.totalorder %s12, 4
      %s22 = sphi 0, %s24
      %s25 = sphi 0, %s22
      %s26 = sphi 0, %s25
      %s42 = sphi 0, %s26
      %s46 = sphi 0, %s46
      %s48 = sphi 0, %s46
      %s49 = sphi 0, %s48
      %s63 = sphi 0, %s49
      %s67 = sphi 0, %s67
      %s69 = sphi 0, %s67
      %s70 = sphi 0, %s69
      %s84 = sphi 0, %s70
      %s90 = sphi 0, %s92
      %s93 = sphi 0, %s90
      %s94 = sphi 0, %s93
      %s110 = sphi 0, %s94
    $region4: #{tpu_custom_call.1} parent=1 // loop_header_branch
      %15 = sbr.rel (%p13) target = $region8
    $region5: #{tpu_custom_call.1} parent=1 // loop_body
      %s17 = ssub.s32 %s12, 1
      %s18 = ssub.s32 %s12, 2
      %s19 = sadd.s32 %s12, 1
      %s20 = ssub.s32 %s12, %s19
      %p21 = scmp.eq.s32.totalorder %s20, 0
      %s23 = sadd.s32 %s22, 1
      %s24 = scalar_select %p21, %s22, %s23
      %p27 = pneg %p21
      %p28 = scmp.eq.s32.totalorder %s12, 1
      %p29 = por %p27, %p28
      %p30 = scmp.ne.s32.totalorder %s22, %s25
      %p31 = scmp.eq.s32.totalorder %s12, 0
      %p32 = por %p30, %p31
      %p33 = scmp.ne.s32.totalorder %s22, %s25
      %p34 = scmp.eq.s32.totalorder %s17, 1
      %p35 = por %p33, %p34
      %p36 = scmp.ne.s32.totalorder %s25, %s26
      %p37 = scmp.eq.s32.totalorder %s17, 0
      %p38 = por %p36, %p37
      %p39 = scmp.ne.s32.totalorder %s25, %s26
      %p40 = scmp.eq.s32.totalorder %s18, 1
      %p41 = por %p39, %p40
      %p43 = scmp.ne.s32.totalorder %s26, %s42
      %p44 = scmp.eq.s32.totalorder %s18, 0
      %p45 = por %p43, %p44
      %s47 = sadd.s32 %s46, 1
      %p50 = scmp.eq.s32.totalorder %s12, 1
      %p51 = scmp.ne.s32.totalorder %s46, %s48
      %p52 = scmp.eq.s32.totalorder %s12, 0
      %p53 = por %p51, %p52
      %p54 = scmp.ne.s32.totalorder %s46, %s48
      %p55 = scmp.eq.s32.totalorder %s17, 1
      %p56 = por %p54, %p55
      %p57 = scmp.ne.s32.totalorder %s48, %s49
      %p58 = scmp.eq.s32.totalorder %s17, 0
      %p59 = por %p57, %p58
      %p60 = scmp.ne.s32.totalorder %s48, %s49
      %p61 = scmp.eq.s32.totalorder %s18, 1
      %p62 = por %p60, %p61
      %p64 = scmp.ne.s32.totalorder %s49, %s63
      %p65 = scmp.eq.s32.totalorder %s18, 0
      %p66 = por %p64, %p65
      %s68 = sadd.s32 %s67, 1
      %p71 = scmp.eq.s32.totalorder %s12, 1
      %p72 = scmp.ne.s32.totalorder %s67, %s69
      %p73 = scmp.eq.s32.totalorder %s12, 0
      %p74 = por %p72, %p73
      %p75 = scmp.ne.s32.totalorder %s67, %s69
      %p76 = scmp.eq.s32.totalorder %s17, 1
      %p77 = por %p75, %p76
      %p78 = scmp.ne.s32.totalorder %s69, %s70
      %p79 = scmp.eq.s32.totalorder %s17, 0
      %p80 = por %p78, %p79
      %p81 = scmp.ne.s32.totalorder %s69, %s70
      %p82 = scmp.eq.s32.totalorder %s18, 1
      %p83 = por %p81, %p82
      %p85 = scmp.ne.s32.totalorder %s70, %s84
      %p86 = scmp.eq.s32.totalorder %s18, 0
      %p87 = por %p85, %p86
      %s88 = ssub.s32 %s12, %s19
      %p89 = scmp.eq.s32.totalorder %s88, 0
      %s91 = sadd.s32 %s90, 1
      %s92 = scalar_select %p89, %s90, %s91
      %p95 = pneg %p89
      %p96 = scmp.eq.s32.totalorder %s12, 1
      %p97 = por %p95, %p96
      %p98 = scmp.ne.s32.totalorder %s90, %s93
      %p99 = scmp.eq.s32.totalorder %s12, 0
      %p100 = por %p98, %p99
      %p101 = scmp.ne.s32.totalorder %s90, %s93
      %p102 = scmp.eq.s32.totalorder %s17, 1
      %p103 = por %p101, %p102
      %p104 = scmp.ne.s32.totalorder %s93, %s94
      %p105 = scmp.eq.s32.totalorder %s17, 0
      %p106 = por %p104, %p105
      %p107 = scmp.ne.s32.totalorder %s93, %s94
      %p108 = scmp.eq.s32.totalorder %s18, 1
      %p109 = por %p107, %p108
      %p111 = scmp.ne.s32.totalorder %s94, %s110
      %p112 = scmp.eq.s32.totalorder %s18, 0
      %p113 = por %p111, %p112
      %p114 = scmp.le.s32.totalorder 1, %s12
      %p115 = scmp.lt.s32.totalorder %s12, 3
      %p116 = pnand %p114, %p115
      %p117 = pneg %p116
      // Predicated region
      $region9: #{tpu_custom_call.1} parent=5 // pred_check
        _
      $region10: #{tpu_custom_call.1} parent=5 // pred_check_branch
        %119 = sbr.rel (%p116) target = $region12
      $region11: #{tpu_custom_call.1} parent=5 // pred_region
        %s120 = ssub.s32 %s12, 1
        // Predicated region
        $region13: #{tpu_custom_call.1} parent=11 // pred_check
          %p121 = pneg %p59
        $region14: #{tpu_custom_call.1} parent=11 // pred_check_branch
          %123 = sbr.rel (%p121) target = $region16
        $region15: #{tpu_custom_call.1} parent=11 // pred_region
          _
        $region16: #{tpu_custom_call.1} parent=11 // pred_fallthru
          _
        // Predicated region
        $region17: #{tpu_custom_call.1} parent=11 // pred_check
          %p124 = pneg %p80
        $region18: #{tpu_custom_call.1} parent=11 // pred_check_branch
          %126 = sbr.rel (%p124) target = $region20
        $region19: #{tpu_custom_call.1} parent=11 // pred_region
          _
        $region20: #{tpu_custom_call.1} parent=11 // pred_fallthru
          _
      $region12: #{tpu_custom_call.1} parent=5 // pred_fallthru
        _
      %p127 = scmp.lt.s32.totalorder %s12, 2
      // Predicated region
      $region21: #{tpu_custom_call.1} parent=5 // pred_check
        %p128 = pneg %p127
      $region22: #{tpu_custom_call.1} parent=5 // pred_check_branch
        %130 = sbr.rel (%p128) target = $region24
      $region23: #{tpu_custom_call.1} parent=5 // pred_region
        // Predicated region
        $region25: #{tpu_custom_call.1} parent=23 // pred_check
          %p131 = pneg %p32
        $region26: #{tpu_custom_call.1} parent=23 // pred_check_branch
          %133 = sbr.rel (%p131) target = $region28
        $region27: #{tpu_custom_call.1} parent=23 // pred_region
          %s134 = smul.u32 16, %s12
          %p135 = scmp.lt.s32.totalorder %s134, 31
          %s136 = scalar_select %p135, %s134, 31
          %s137 = smul.addr %s136, 2
          %s138 = smul.addr %s137, 8
          %s139 = scalar_lea.vmem %s0, %s138
          %s140 = smul.u32 16, %s12
        $region28: #{tpu_custom_call.1} parent=23 // pred_fallthru
          _
      $region24: #{tpu_custom_call.1} parent=5 // pred_fallthru
        _
      %p141 = scmp.le.s32.totalorder 1, %s12
      %p142 = scmp.lt.s32.totalorder %s12, 3
      %p143 = pnand %p141, %p142
      %p144 = pneg %p143
      // Predicated region
      $region29: #{tpu_custom_call.1} parent=5 // pred_check
        _
      $region30: #{tpu_custom_call.1} parent=5 // pred_check_branch
        %146 = sbr.rel (%p143) target = $region32
      $region31: #{tpu_custom_call.1} parent=5 // pred_region
        %s147 = ssub.s32 %s12, 1
        %s148 = smul.u32 16, %s17
        %p149 = scmp.lt.s32.totalorder %s148, 31
        %s150 = scalar_select %p149, %s148, 31
        %s151 = smul.addr %s150, 2
        %s152 = smul.addr %s151, 8
        %s153 = scalar_lea.vmem %s0, %s152
        %p154 = pneg %p38
        %p155 = pneg %p35
        %p156 = pneg %p59
        %p157 = pneg %p56
        %p158 = pneg %p80
        %p159 = pneg %p77
        %p160 = pneg %p106
        %p161 = pneg %p103
        %s162 = sand.u32 %s93, 1
        %s163 = scalar_lea.sflag [#allocation3], %s162
        %s164 = sand.u32 %s93, 1
        %s165 = smul.addr %s164, 256
        %s166 = scalar_lea.vmem [#allocation2], %s165
        %s167 = smul.u32 16, %s17
        %p168 = scmp.lt.s32.totalorder %s167, 31
        %s169 = scalar_select %p168, %s167, 31
        %s170 = smul.addr %s169, 2
        %s171 = smul.addr %s170, 8
        %s172 = scalar_lea.vmem %s0, %s171
        %s173 = smul.u32 16, %s17
        %s174 = smul.u32 16, %s17
        %v176 = vld [vmem:[%s172] sm:$0xff]
        %v177 = vld [vmem:[%s172 + $0x8] sm:$0xff]
        %v178 = vld [vmem:[%s172 + $0x10] sm:$0xff]
        %v179 = vld [vmem:[%s172 + $0x18] sm:$0xff]
        %v180 = vld [vmem:[%s172 + $0x20] sm:$0xff]
        %v181 = vld [vmem:[%s172 + $0x28] sm:$0xff]
        %v182 = vld [vmem:[%s172 + $0x30] sm:$0xff]
        %v183 = vld [vmem:[%s172 + $0x38] sm:$0xff]
        %v184 = vld [vmem:[%s172 + $0x40] sm:$0xff]
        %v185 = vld [vmem:[%s172 + $0x48] sm:$0xff]
        %v186 = vld [vmem:[%s172 + $0x50] sm:$0xff]
        %v187 = vld [vmem:[%s172 + $0x58] sm:$0xff]
        %v188 = vld [vmem:[%s172 + $0x60] sm:$0xff]
        %v189 = vld [vmem:[%s172 + $0x68] sm:$0xff]
        %v190 = vld [vmem:[%s172 + $0x70] sm:$0xff]
        %v191 = vld [vmem:[%s172 + $0x78] sm:$0xff]
        %v192 = vld [vmem:[%s172 + $0x80] sm:$0xff]
        %v193 = vld [vmem:[%s172 + $0x88] sm:$0xff]
        %v194 = vld [vmem:[%s172 + $0x90] sm:$0xff]
        %v195 = vld [vmem:[%s172 + $0x98] sm:$0xff]
        %v196 = vld [vmem:[%s172 + $0xa0] sm:$0xff]
        %v197 = vld [vmem:[%s172 + $0xa8] sm:$0xff]
        %v198 = vld [vmem:[%s172 + $0xb0] sm:$0xff]
        %v199 = vld [vmem:[%s172 + $0xb8] sm:$0xff]
        %v200 = vld [vmem:[%s172 + $0xc0] sm:$0xff]
        %v201 = vld [vmem:[%s172 + $0xc8] sm:$0xff]
        %v202 = vld [vmem:[%s172 + $0xd0] sm:$0xff]
        %v203 = vld [vmem:[%s172 + $0xd8] sm:$0xff]
        %v204 = vld [vmem:[%s172 + $0xe0] sm:$0xff]
        %v205 = vld [vmem:[%s172 + $0xe8] sm:$0xff]
        %v206 = vld [vmem:[%s172 + $0xf0] sm:$0xff]
        %v207 = vld [vmem:[%s172 + $0xf8] sm:$0xff]
        %v208 = vpack.c.bf16 %v177, %v176
        %v209 = vpack.c.bf16 %v179, %v178
        %v210 = vpack.c.bf16 %v181, %v180
        %v211 = vpack.c.bf16 %v183, %v182
        %v212 = vpack.c.bf16 %v185, %v184
        %v213 = vpack.c.bf16 %v187, %v186
        %v214 = vpack.c.bf16 %v189, %v188
        %v215 = vpack.c.bf16 %v191, %v190
        %v216 = vpack.c.bf16 %v193, %v192
        %v217 = vpack.c.bf16 %v195, %v194
        %v218 = vpack.c.bf16 %v197, %v196
        %v219 = vpack.c.bf16 %v199, %v198
        %v220 = vpack.c.bf16 %v201, %v200
        %v221 = vpack.c.bf16 %v203, %v202
        %v222 = vpack.c.bf16 %v205, %v204
        %v223 = vpack.c.bf16 %v207, %v206
        %v224 = vld [vmem:[%s1] sm:$0xf]
        %v225 = vld [vmem:[%s1 + $0x4] sm:$0xf]
        %v228 = vunpack.c.l.b16 %v224
        %v229 = vunpack.c.l.b16 %v225
        %v230 = vpack.c.b16 %v229, %v228
        %vm232 = vcmask 130048
        %v234 = vsel %vm232, %v208, 0
        %v237 = vsel %vm232, %v209, 0
        %v240 = vsel %vm232, %v210, 0
        %v243 = vsel %vm232, %v211, 0
        %v246 = vsel %vm232, %v212, 0
        %v249 = vsel %vm232, %v213, 0
        %v252 = vsel %vm232, %v214, 0
        %v255 = vsel %vm232, %v215, 0
        %v258 = vsel %vm232, %v216, 0
        %v261 = vsel %vm232, %v217, 0
        %v264 = vsel %vm232, %v218, 0
        %v267 = vsel %vm232, %v219, 0
        %v270 = vsel %vm232, %v220, 0
        %v273 = vsel %vm232, %v221, 0
        %v276 = vsel %vm232, %v222, 0
        %v279 = vsel %vm232, %v223, 0
        %281 = vmatprep.subr.bf16.mxu0 0
        %282 = vmatpush1.bf16.msra.mxu0 %v230
        %283 = vmatprep.subr.bf16.mxu0 0
        %284 = vmatpush1.bf16.msra.mxu0 0
        %285 = vmatprep.subr.bf16.mxu0 0
        %286 = vmatpush1.bf16.msra.mxu0 0
        %287 = vmatprep.subr.bf16.mxu0 0
        %288 = vmatpush1.bf16.msra.mxu0 0
        %289 = vmatprep.subr.bf16.mxu0 0
        %290 = vmatpush1.bf16.msra.mxu0 0
        %291 = vmatprep.subr.bf16.mxu0 0
        %292 = vmatpush1.bf16.msra.mxu0 0
        %293 = vmatprep.subr.bf16.mxu0 0
        %294 = vmatpush1.bf16.msra.mxu0 0
        %295 = vmatprep.subr.bf16.mxu0 0
        %296 = vmatpush1.bf16.msra.mxu0 0
        %297 = vmatprep.subr.bf16.mxu0 0
        %298 = vmatpush1.bf16.msra.mxu0 0
        %299 = vmatprep.subr.bf16.mxu0 0
        %300 = vmatpush1.bf16.msra.mxu0 0
        %301 = vmatprep.subr.bf16.mxu0 0
        %302 = vmatpush1.bf16.msra.mxu0 0
        %303 = vmatprep.subr.bf16.mxu0 0
        %304 = vmatpush1.bf16.msra.mxu0 0
        %305 = vmatprep.subr.bf16.mxu0 0
        %306 = vmatpush1.bf16.msra.mxu0 0
        %307 = vmatprep.subr.bf16.mxu0 0
        %308 = vmatpush1.bf16.msra.mxu0 0
        %309 = vmatprep.subr.bf16.mxu0 0
        %310 = vmatpush1.bf16.msra.mxu0 0
        %311 = vmatprep.subr.bf16.mxu0 0
        %312 = vmatpush1.bf16.msra.mxu0 0
        %313 = vmatprep.mubr.bf16.mxu0 0
        %314 = vmatmul.mubr.bf16.gmra.mrb[0].mxu0 %v234
        %v315 = vpop.f32.mrb[0].mxu0
        %v316 = vadd.f32 0.0, %v315
        %v317 = vpop.f32.mrb[0].mxu0
        %v318 = vpop.f32.mrb[0].mxu0
        %v319 = vadd.f32 0.0, %v318
        %v320 = vpop.f32.mrb[0].mxu0
        %321 = vmatprep.mubr.bf16.mxu0 0
        %322 = vmatmul.mubr.bf16.gmra.mrb[0].mxu0 %v237
        %v323 = vpop.f32.mrb[0].mxu0
        %v324 = vadd.f32 0.0, %v323
        %v325 = vpop.f32.mrb[0].mxu0
        %v326 = vpop.f32.mrb[0].mxu0
        %v327 = vadd.f32 0.0, %v326
        %v328 = vpop.f32.mrb[0].mxu0
        %329 = vmatprep.mubr.bf16.mxu0 0
        %330 = vmatmul.mubr.bf16.gmra.mrb[0].mxu0 %v240
        %v331 = vpop.f32.mrb[0].mxu0
        %v332 = vadd.f32 0.0, %v331
        %v333 = vpop.f32.mrb[0].mxu0
        %v334 = vpop.f32.mrb[0].mxu0
        %v335 = vadd.f32 0.0, %v334
        %v336 = vpop.f32.mrb[0].mxu0
        %337 = vmatprep.mubr.bf16.mxu0 0
        %338 = vmatmul.mubr.bf16.gmra.mrb[0].mxu0 %v243
        %v339 = vpop.f32.mrb[0].mxu0
        %v340 = vadd.f32 0.0, %v339
        %v341 = vpop.f32.mrb[0].mxu0
        %v342 = vpop.f32.mrb[0].mxu0
        %v343 = vadd.f32 0.0, %v342
        %v344 = vpop.f32.mrb[0].mxu0
        %345 = vmatprep.mubr.bf16.mxu0 0
        %346 = vmatmul.mubr.bf16.gmra.mrb[0].mxu0 %v246
        %v347 = vpop.f32.mrb[0].mxu0
        %v348 = vadd.f32 0.0, %v347
        %v349 = vpop.f32.mrb[0].mxu0
        %v350 = vpop.f32.mrb[0].mxu0
        %v351 = vadd.f32 0.0, %v350
        %v352 = vpop.f32.mrb[0].mxu0
        %353 = vmatprep.mubr.bf16.mxu0 0
        %354 = vmatmul.mubr.bf16.gmra.mrb[0].mxu0 %v249
        %v355 = vpop.f32.mrb[0].mxu0
        %v356 = vadd.f32 0.0, %v355
        %v357 = vpop.f32.mrb[0].mxu0
        %v358 = vpop.f32.mrb[0].mxu0
        %v359 = vadd.f32 0.0, %v358
        %v360 = vpop.f32.mrb[0].mxu0
        %361 = vmatprep.mubr.bf16.mxu0 0
        %362 = vmatmul.mubr.bf16.gmra.mrb[0].mxu0 %v252
        %v363 = vpop.f32.mrb[0].mxu0
        %v364 = vadd.f32 0.0, %v363
        %v365 = vpop.f32.mrb[0].mxu0
        %v366 = vpop.f32.mrb[0].mxu0
        %v367 = vadd.f32 0.0, %v366
        %v368 = vpop.f32.mrb[0].mxu0
        %369 = vmatprep.mubr.bf16.mxu0 0
        %370 = vmatmul.mubr.bf16.gmra.mrb[0].mxu0 %v255
        %v371 = vpop.f32.mrb[0].mxu0
        %v372 = vadd.f32 0.0, %v371
        %v373 = vpop.f32.mrb[0].mxu0
        %v374 = vpop.f32.mrb[0].mxu0
        %v375 = vadd.f32 0.0, %v374
        %v376 = vpop.f32.mrb[0].mxu0
        %377 = vmatprep.mubr.bf16.mxu0 0
        %378 = vmatmul.mubr.bf16.gmra.mrb[0].mxu0 %v258
        %v379 = vpop.f32.mrb[0].mxu0
        %v380 = vadd.f32 0.0, %v379
        %v381 = vpop.f32.mrb[0].mxu0
        %v382 = vpop.f32.mrb[0].mxu0
        %v383 = vadd.f32 0.0, %v382
        %v384 = vpop.f32.mrb[0].mxu0
        %385 = vmatprep.mubr.bf16.mxu0 0
        %386 = vmatmul.mubr.bf16.gmra.mrb[0].mxu0 %v261
        %v387 = vpop.f32.mrb[0].mxu0
        %v388 = vadd.f32 0.0, %v387
        %v389 = vpop.f32.mrb[0].mxu0
        %v390 = vpop.f32.mrb[0].mxu0
        %v391 = vadd.f32 0.0, %v390
        %v392 = vpop.f32.mrb[0].mxu0
        %393 = vmatprep.mubr.bf16.mxu0 0
        %394 = vmatmul.mubr.bf16.gmra.mrb[0].mxu0 %v264
        %v395 = vpop.f32.mrb[0].mxu0
        %v396 = vadd.f32 0.0, %v395
        %v397 = vpop.f32.mrb[0].mxu0
        %v398 = vpop.f32.mrb[0].mxu0
        %v399 = vadd.f32 0.0, %v398
        %v400 = vpop.f32.mrb[0].mxu0
        %401 = vmatprep.mubr.bf16.mxu0 0
        %402 = vmatmul.mubr.bf16.gmra.mrb[0].mxu0 %v267
        %v403 = vpop.f32.mrb[0].mxu0
        %v404 = vadd.f32 0.0, %v403
        %v405 = vpop.f32.mrb[0].mxu0
        %v406 = vpop.f32.mrb[0].mxu0
        %v407 = vadd.f32 0.0, %v406
        %v408 = vpop.f32.mrb[0].mxu0
        %409 = vmatprep.mubr.bf16.mxu0 0
        %410 = vmatmul.mubr.bf16.gmra.mrb[0].mxu0 %v270
        %v411 = vpop.f32.mrb[0].mxu0
        %v412 = vadd.f32 0.0, %v411
        %v413 = vpop.f32.mrb[0].mxu0
        %v414 = vpop.f32.mrb[0].mxu0
        %v415 = vadd.f32 0.0, %v414
        %v416 = vpop.f32.mrb[0].mxu0
        %417 = vmatprep.mubr.bf16.mxu0 0
        %418 = vmatmul.mubr.bf16.gmra.mrb[0].mxu0 %v273
        %v419 = vpop.f32.mrb[0].mxu0
        %v420 = vadd.f32 0.0, %v419
        %v421 = vpop.f32.mrb[0].mxu0
        %v422 = vpop.f32.mrb[0].mxu0
        %v423 = vadd.f32 0.0, %v422
        %v424 = vpop.f32.mrb[0].mxu0
        %425 = vmatprep.mubr.bf16.mxu0 0
        %426 = vmatmul.mubr.bf16.gmra.mrb[0].mxu0 %v276
        %v427 = vpop.f32.mrb[0].mxu0
        %v428 = vadd.f32 0.0, %v427
        %v429 = vpop.f32.mrb[0].mxu0
        %v430 = vpop.f32.mrb[0].mxu0
        %v431 = vadd.f32 0.0, %v430
        %v432 = vpop.f32.mrb[0].mxu0
        %433 = vmatprep.mubr.bf16.mxu0 0
        %434 = vmatmul.mubr.bf16.gmra.mrb[0].mxu0 %v279
        %v435 = vpop.f32.mrb[0].mxu0
        %v436 = vadd.f32 0.0, %v435
        %v437 = vpop.f32.mrb[0].mxu0
        %v438 = vpop.f32.mrb[0].mxu0
        %v439 = vadd.f32 0.0, %v438
        %v440 = vpop.f32.mrb[0].mxu0
        %441 = vdwg.mxu0
        %vm442 = vcmp.gt.f32.partialorder %v316, 114.0
        %vm443 = vcmp.gt.f32.partialorder %v319, 114.0
        %vm444 = vcmp.gt.f32.partialorder %v324, 114.0
        %vm445 = vcmp.gt.f32.partialorder %v327, 114.0
        %vm446 = vcmp.gt.f32.partialorder %v332, 114.0
        %vm447 = vcmp.gt.f32.partialorder %v335, 114.0
        %vm448 = vcmp.gt.f32.partialorder %v340, 114.0
        %vm449 = vcmp.gt.f32.partialorder %v343, 114.0
        %vm450 = vcmp.gt.f32.partialorder %v348, 114.0
        %vm451 = vcmp.gt.f32.partialorder %v351, 114.0
        %vm452 = vcmp.gt.f32.partialorder %v356, 114.0
        %vm453 = vcmp.gt.f32.partialorder %v359, 114.0
        %vm454 = vcmp.gt.f32.partialorder %v364, 114.0
        %vm455 = vcmp.gt.f32.partialorder %v367, 114.0
        %vm456 = vcmp.gt.f32.partialorder %v372, 114.0
        %vm457 = vcmp.gt.f32.partialorder %v375, 114.0
        %vm458 = vcmp.gt.f32.partialorder %v380, 114.0
        %vm459 = vcmp.gt.f32.partialorder %v383, 114.0
        %vm460 = vcmp.gt.f32.partialorder %v388, 114.0
        %vm461 = vcmp.gt.f32.partialorder %v391, 114.0
        %vm462 = vcmp.gt.f32.partialorder %v396, 114.0
        %vm463 = vcmp.gt.f32.partialorder %v399, 114.0
        %vm464 = vcmp.gt.f32.partialorder %v404, 114.0
        %vm465 = vcmp.gt.f32.partialorder %v407, 114.0
        %vm466 = vcmp.gt.f32.partialorder %v412, 114.0
        %vm467 = vcmp.gt.f32.partialorder %v415, 114.0
        %vm468 = vcmp.gt.f32.partialorder %v420, 114.0
        %vm469 = vcmp.gt.f32.partialorder %v423, 114.0
        %vm470 = vcmp.gt.f32.partialorder %v428, 114.0
        %vm471 = vcmp.gt.f32.partialorder %v431, 114.0
        %vm472 = vcmp.gt.f32.partialorder %v436, 114.0
        %vm473 = vcmp.gt.f32.partialorder %v439, 114.0
        %v474 = vsel %vm442, 1, 0
        %v475 = vsel %vm443, 1, 0
        %v476 = vsel %vm444, 1, 0
        %v477 = vsel %vm445, 1, 0
        %v478 = vsel %vm446, 1, 0
        %v479 = vsel %vm447, 1, 0
        %v480 = vsel %vm448, 1, 0
        %v481 = vsel %vm449, 1, 0
        %v482 = vsel %vm450, 1, 0
        %v483 = vsel %vm451, 1, 0
        %v484 = vsel %vm452, 1, 0
        %v485 = vsel %vm453, 1, 0
        %v486 = vsel %vm454, 1, 0
        %v487 = vsel %vm455, 1, 0
        %v488 = vsel %vm456, 1, 0
        %v489 = vsel %vm457, 1, 0
        %v490 = vsel %vm458, 1, 0
        %v491 = vsel %vm459, 1, 0
        %v492 = vsel %vm460, 1, 0
        %v493 = vsel %vm461, 1, 0
        %v494 = vsel %vm462, 1, 0
        %v495 = vsel %vm463, 1, 0
        %v496 = vsel %vm464, 1, 0
        %v497 = vsel %vm465, 1, 0
        %v498 = vsel %vm466, 1, 0
        %v499 = vsel %vm467, 1, 0
        %v500 = vsel %vm468, 1, 0
        %v501 = vsel %vm469, 1, 0
        %v502 = vsel %vm470, 1, 0
        %v503 = vsel %vm471, 1, 0
        %v504 = vsel %vm472, 1, 0
        %v505 = vsel %vm473, 1, 0
        %v506 = vcvt.s32.f32 %v474
        %v507 = vcvt.s32.f32 %v475
        %v508 = vcvt.s32.f32 %v476
        %v509 = vcvt.s32.f32 %v477
        %v510 = vcvt.s32.f32 %v478
        %v511 = vcvt.s32.f32 %v479
        %v512 = vcvt.s32.f32 %v480
        %v513 = vcvt.s32.f32 %v481
        %v514 = vcvt.s32.f32 %v482
        %v515 = vcvt.s32.f32 %v483
        %v516 = vcvt.s32.f32 %v484
        %v517 = vcvt.s32.f32 %v485
        %v518 = vcvt.s32.f32 %v486
        %v519 = vcvt.s32.f32 %v487
        %v520 = vcvt.s32.f32 %v488
        %v521 = vcvt.s32.f32 %v489
        %v522 = vcvt.s32.f32 %v490
        %v523 = vcvt.s32.f32 %v491
        %v524 = vcvt.s32.f32 %v492
        %v525 = vcvt.s32.f32 %v493
        %v526 = vcvt.s32.f32 %v494
        %v527 = vcvt.s32.f32 %v495
        %v528 = vcvt.s32.f32 %v496
        %v529 = vcvt.s32.f32 %v497
        %v530 = vcvt.s32.f32 %v498
        %v531 = vcvt.s32.f32 %v499
        %v532 = vcvt.s32.f32 %v500
        %v533 = vcvt.s32.f32 %v501
        %v534 = vcvt.s32.f32 %v502
        %v535 = vcvt.s32.f32 %v503
        %v536 = vcvt.s32.f32 %v504
        %v537 = vcvt.s32.f32 %v505
        %v538 = vpack.c.bf16 %v507, %v506
        %v539 = vpack.c.bf16 %v509, %v508
        %v540 = vpack.c.bf16 %v511, %v510
        %v541 = vpack.c.bf16 %v513, %v512
        %v542 = vpack.c.bf16 %v515, %v514
        %v543 = vpack.c.bf16 %v517, %v516
        %v544 = vpack.c.bf16 %v519, %v518
        %v545 = vpack.c.bf16 %v521, %v520
        %v546 = vpack.c.bf16 %v523, %v522
        %v547 = vpack.c.bf16 %v525, %v524
        %v548 = vpack.c.bf16 %v527, %v526
        %v549 = vpack.c.bf16 %v529, %v528
        %v550 = vpack.c.bf16 %v531, %v530
        %v551 = vpack.c.bf16 %v533, %v532
        %v552 = vpack.c.bf16 %v535, %v534
        %v553 = vpack.c.bf16 %v537, %v536
        %v554 = vld [vmem:[%s2] sm:$0xf]
        %v555 = vld [vmem:[%s2 + $0x4] sm:$0xf]
        %v556 = vld [vmem:[%s2 + $0x8] sm:$0xf]
        %v557 = vld [vmem:[%s2 + $0xc] sm:$0xf]
        %v558 = vld [vmem:[%s2 + $0x10] sm:$0xf]
        %v559 = vld [vmem:[%s2 + $0x14] sm:$0xf]
        %v560 = vld [vmem:[%s2 + $0x18] sm:$0xf]
        %v561 = vld [vmem:[%s2 + $0x1c] sm:$0xf]
        %v562 = vld [vmem:[%s2 + $0x20] sm:$0xf]
        %v563 = vld [vmem:[%s2 + $0x24] sm:$0xf]
        %v564 = vld [vmem:[%s2 + $0x28] sm:$0xf]
        %v565 = vld [vmem:[%s2 + $0x2c] sm:$0xf]
        %v566 = vld [vmem:[%s2 + $0x30] sm:$0xf]
        %v567 = vld [vmem:[%s2 + $0x34] sm:$0xf]
        %v568 = vld [vmem:[%s2 + $0x38] sm:$0xf]
        %v569 = vld [vmem:[%s2 + $0x3c] sm:$0xf]
        %v586 = vunpack.c.l.b16 %v554
        %v587 = vunpack.c.l.b16 %v555
        %v588 = vunpack.c.l.b16 %v556
        %v589 = vunpack.c.l.b16 %v557
        %v590 = vunpack.c.l.b16 %v558
        %v591 = vunpack.c.l.b16 %v559
        %v592 = vunpack.c.l.b16 %v560
        %v593 = vunpack.c.l.b16 %v561
        %v594 = vunpack.c.l.b16 %v562
        %v595 = vunpack.c.l.b16 %v563
        %v596 = vunpack.c.l.b16 %v564
        %v597 = vunpack.c.l.b16 %v565
        %v598 = vunpack.c.l.b16 %v566
        %v599 = vunpack.c.l.b16 %v567
        %v600 = vunpack.c.l.b16 %v568
        %v601 = vunpack.c.l.b16 %v569
        %v602 = vpack.c.b16 %v587, %v586
        %v603 = vpack.c.b16 %v589, %v588
        %v604 = vpack.c.b16 %v591, %v590
        %v605 = vpack.c.b16 %v593, %v592
        %v606 = vpack.c.b16 %v595, %v594
        %v607 = vpack.c.b16 %v597, %v596
        %v608 = vpack.c.b16 %v599, %v598
        %v609 = vpack.c.b16 %v601, %v600
        %618 = vmatprep.subr.bf16.mxu0 0
        %619 = vmatpush1.bf16.msra.mxu0 %v602
        %620 = vmatprep.subr.bf16.mxu0 0
        %621 = vmatpush1.bf16.msra.mxu0 %v603
        %622 = vmatprep.subr.bf16.mxu0 0
        %623 = vmatpush1.bf16.msra.mxu0 %v604
        %624 = vmatprep.subr.bf16.mxu0 0
        %625 = vmatpush1.bf16.msra.mxu0 %v605
        %626 = vmatprep.subr.bf16.mxu0 0
        %627 = vmatpush1.bf16.msra.mxu0 %v606
        %628 = vmatprep.subr.bf16.mxu0 0
        %629 = vmatpush1.bf16.msra.mxu0 %v607
        %630 = vmatprep.subr.bf16.mxu0 0
        %631 = vmatpush1.bf16.msra.mxu0 %v608
        %632 = vmatprep.subr.bf16.mxu0 0
        %633 = vmatpush1.bf16.msra.mxu0 %v609
        %634 = vmatprep.subr.bf16.mxu0 0
        %635 = vmatpush1.bf16.msra.mxu0 0
        %636 = vmatprep.subr.bf16.mxu0 0
        %637 = vmatpush1.bf16.msra.mxu0 0
        %638 = vmatprep.subr.bf16.mxu0 0
        %639 = vmatpush1.bf16.msra.mxu0 0
        %640 = vmatprep.subr.bf16.mxu0 0
        %641 = vmatpush1.bf16.msra.mxu0 0
        %642 = vmatprep.subr.bf16.mxu0 0
        %643 = vmatpush1.bf16.msra.mxu0 0
        %644 = vmatprep.subr.bf16.mxu0 0
        %645 = vmatpush1.bf16.msra.mxu0 0
        %646 = vmatprep.subr.bf16.mxu0 0
        %647 = vmatpush1.bf16.msra.mxu0 0
        %648 = vmatprep.subr.bf16.mxu0 0
        %649 = vmatpush1.bf16.msra.mxu0 0
        %650 = vmatprep.mubr.bf16.mxu0 0
        %651 = vmatmul.mubr.bf16.gmra.mrb[0].mxu0 %v538
        %v652 = vpop.f32.mrb[0].mxu0
        %v653 = vadd.f32 0.0, %v652
        %v654 = vpop.f32.mrb[0].mxu0
        %v655 = vpop.f32.mrb[0].mxu0
        %v656 = vadd.f32 0.0, %v655
        %v657 = vpop.f32.mrb[0].mxu0
        %658 = vmatprep.mubr.bf16.mxu0 0
        %659 = vmatmul.mubr.bf16.gmra.mrb[0].mxu0 %v539
        %v660 = vpop.f32.mrb[0].mxu0
        %v661 = vadd.f32 0.0, %v660
        %v662 = vpop.f32.mrb[0].mxu0
        %v663 = vpop.f32.mrb[0].mxu0
        %v664 = vadd.f32 0.0, %v663
        %v665 = vpop.f32.mrb[0].mxu0
        %666 = vmatprep.mubr.bf16.mxu0 0
        %667 = vmatmul.mubr.bf16.gmra.mrb[0].mxu0 %v540
        %v668 = vpop.f32.mrb[0].mxu0
        %v669 = vadd.f32 0.0, %v668
        %v670 = vpop.f32.mrb[0].mxu0
        %v671 = vpop.f32.mrb[0].mxu0
        %v672 = vadd.f32 0.0, %v671
        %v673 = vpop.f32.mrb[0].mxu0
        %674 = vmatprep.mubr.bf16.mxu0 0
        %675 = vmatmul.mubr.bf16.gmra.mrb[0].mxu0 %v541
        %v676 = vpop.f32.mrb[0].mxu0
        %v677 = vadd.f32 0.0, %v676
        %v678 = vpop.f32.mrb[0].mxu0
        %v679 = vpop.f32.mrb[0].mxu0
        %v680 = vadd.f32 0.0, %v679
        %v681 = vpop.f32.mrb[0].mxu0
        %682 = vmatprep.mubr.bf16.mxu0 0
        %683 = vmatmul.mubr.bf16.gmra.mrb[0].mxu0 %v542
        %v684 = vpop.f32.mrb[0].mxu0
        %v685 = vadd.f32 0.0, %v684
        %v686 = vpop.f32.mrb[0].mxu0
        %v687 = vpop.f32.mrb[0].mxu0
        %v688 = vadd.f32 0.0, %v687
        %v689 = vpop.f32.mrb[0].mxu0
        %690 = vmatprep.mubr.bf16.mxu0 0
        %691 = vmatmul.mubr.bf16.gmra.mrb[0].mxu0 %v543
        %v692 = vpop.f32.mrb[0].mxu0
        %v693 = vadd.f32 0.0, %v692
        %v694 = vpop.f32.mrb[0].mxu0
        %v695 = vpop.f32.mrb[0].mxu0
        %v696 = vadd.f32 0.0, %v695
        %v697 = vpop.f32.mrb[0].mxu0
        %698 = vmatprep.mubr.bf16.mxu0 0
        %699 = vmatmul.mubr.bf16.gmra.mrb[0].mxu0 %v544
        %v700 = vpop.f32.mrb[0].mxu0
        %v701 = vadd.f32 0.0, %v700
        %v702 = vpop.f32.mrb[0].mxu0
        %v703 = vpop.f32.mrb[0].mxu0
        %v704 = vadd.f32 0.0, %v703
        %v705 = vpop.f32.mrb[0].mxu0
        %706 = vmatprep.mubr.bf16.mxu0 0
        %707 = vmatmul.mubr.bf16.gmra.mrb[0].mxu0 %v545
        %v708 = vpop.f32.mrb[0].mxu0
        %v709 = vadd.f32 0.0, %v708
        %v710 = vpop.f32.mrb[0].mxu0
        %v711 = vpop.f32.mrb[0].mxu0
        %v712 = vadd.f32 0.0, %v711
        %v713 = vpop.f32.mrb[0].mxu0
        %714 = vmatprep.mubr.bf16.mxu0 0
        %715 = vmatmul.mubr.bf16.gmra.mrb[0].mxu0 %v546
        %v716 = vpop.f32.mrb[0].mxu0
        %v717 = vadd.f32 0.0, %v716
        %v718 = vpop.f32.mrb[0].mxu0
        %v719 = vpop.f32.mrb[0].mxu0
        %v720 = vadd.f32 0.0, %v719
        %v721 = vpop.f32.mrb[0].mxu0
        %722 = vmatprep.mubr.bf16.mxu0 0
        %723 = vmatmul.mubr.bf16.gmra.mrb[0].mxu0 %v547
        %v724 = vpop.f32.mrb[0].mxu0
        %v725 = vadd.f32 0.0, %v724
        %v726 = vpop.f32.mrb[0].mxu0
        %v727 = vpop.f32.mrb[0].mxu0
        %v728 = vadd.f32 0.0, %v727
        %v729 = vpop.f32.mrb[0].mxu0
        %730 = vmatprep.mubr.bf16.mxu0 0
        %731 = vmatmul.mubr.bf16.gmra.mrb[0].mxu0 %v548
        %v732 = vpop.f32.mrb[0].mxu0
        %v733 = vadd.f32 0.0, %v732
        %v734 = vpop.f32.mrb[0].mxu0
        %v735 = vpop.f32.mrb[0].mxu0
        %v736 = vadd.f32 0.0, %v735
        %v737 = vpop.f32.mrb[0].mxu0
        %738 = vmatprep.mubr.bf16.mxu0 0
        %739 = vmatmul.mubr.bf16.gmra.mrb[0].mxu0 %v549
        %v740 = vpop.f32.mrb[0].mxu0
        %v741 = vadd.f32 0.0, %v740
        %v742 = vpop.f32.mrb[0].mxu0
        %v743 = vpop.f32.mrb[0].mxu0
        %v744 = vadd.f32 0.0, %v743
        %v745 = vpop.f32.mrb[0].mxu0
        %746 = vmatprep.mubr.bf16.mxu0 0
        %747 = vmatmul.mubr.bf16.gmra.mrb[0].mxu0 %v550
        %v748 = vpop.f32.mrb[0].mxu0
        %v749 = vadd.f32 0.0, %v748
        %v750 = vpop.f32.mrb[0].mxu0
        %v751 = vpop.f32.mrb[0].mxu0
        %v752 = vadd.f32 0.0, %v751
        %v753 = vpop.f32.mrb[0].mxu0
        %754 = vmatprep.mubr.bf16.mxu0 0
        %755 = vmatmul.mubr.bf16.gmra.mrb[0].mxu0 %v551
        %v756 = vpop.f32.mrb[0].mxu0
        %v757 = vadd.f32 0.0, %v756
        %v758 = vpop.f32.mrb[0].mxu0
        %v759 = vpop.f32.mrb[0].mxu0
        %v760 = vadd.f32 0.0, %v759
        %v761 = vpop.f32.mrb[0].mxu0
        %762 = vmatprep.mubr.bf16.mxu0 0
        %763 = vmatmul.mubr.bf16.gmra.mrb[0].mxu0 %v552
        %v764 = vpop.f32.mrb[0].mxu0
        %v765 = vadd.f32 0.0, %v764
        %v766 = vpop.f32.mrb[0].mxu0
        %v767 = vpop.f32.mrb[0].mxu0
        %v768 = vadd.f32 0.0, %v767
        %v769 = vpop.f32.mrb[0].mxu0
        %770 = vmatprep.mubr.bf16.mxu0 0
        %771 = vmatmul.mubr.bf16.gmra.mrb[0].mxu0 %v553
        %v772 = vpop.f32.mrb[0].mxu0
        %v773 = vadd.f32 0.0, %v772
        %v774 = vpop.f32.mrb[0].mxu0
        %v775 = vpop.f32.mrb[0].mxu0
        %v776 = vadd.f32 0.0, %v775
        %v777 = vpop.f32.mrb[0].mxu0
        %778 = vdwg.mxu0
        %vm779 = vcmp.gt.f32.partialorder %v653, 114.0
        %vm780 = vcmp.gt.f32.partialorder %v656, 114.0
        %vm781 = vcmp.gt.f32.partialorder %v661, 114.0
        %vm782 = vcmp.gt.f32.partialorder %v664, 114.0
        %vm783 = vcmp.gt.f32.partialorder %v669, 114.0
        %vm784 = vcmp.gt.f32.partialorder %v672, 114.0
        %vm785 = vcmp.gt.f32.partialorder %v677, 114.0
        %vm786 = vcmp.gt.f32.partialorder %v680, 114.0
        %vm787 = vcmp.gt.f32.partialorder %v685, 114.0
        %vm788 = vcmp.gt.f32.partialorder %v688, 114.0
        %vm789 = vcmp.gt.f32.partialorder %v693, 114.0
        %vm790 = vcmp.gt.f32.partialorder %v696, 114.0
        %vm791 = vcmp.gt.f32.partialorder %v701, 114.0
        %vm792 = vcmp.gt.f32.partialorder %v704, 114.0
        %vm793 = vcmp.gt.f32.partialorder %v709, 114.0
        %vm794 = vcmp.gt.f32.partialorder %v712, 114.0
        %vm795 = vcmp.gt.f32.partialorder %v717, 114.0
        %vm796 = vcmp.gt.f32.partialorder %v720, 114.0
        %vm797 = vcmp.gt.f32.partialorder %v725, 114.0
        %vm798 = vcmp.gt.f32.partialorder %v728, 114.0
        %vm799 = vcmp.gt.f32.partialorder %v733, 114.0
        %vm800 = vcmp.gt.f32.partialorder %v736, 114.0
        %vm801 = vcmp.gt.f32.partialorder %v741, 114.0
        %vm802 = vcmp.gt.f32.partialorder %v744, 114.0
        %vm803 = vcmp.gt.f32.partialorder %v749, 114.0
        %vm804 = vcmp.gt.f32.partialorder %v752, 114.0
        %vm805 = vcmp.gt.f32.partialorder %v757, 114.0
        %vm806 = vcmp.gt.f32.partialorder %v760, 114.0
        %vm807 = vcmp.gt.f32.partialorder %v765, 114.0
        %vm808 = vcmp.gt.f32.partialorder %v768, 114.0
        %vm809 = vcmp.gt.f32.partialorder %v773, 114.0
        %vm810 = vcmp.gt.f32.partialorder %v776, 114.0
        %v811 = vsel %vm779, 1, 0
        %v812 = vsel %vm780, 1, 0
        %v813 = vsel %vm781, 1, 0
        %v814 = vsel %vm782, 1, 0
        %v815 = vsel %vm783, 1, 0
        %v816 = vsel %vm784, 1, 0
        %v817 = vsel %vm785, 1, 0
        %v818 = vsel %vm786, 1, 0
        %v819 = vsel %vm787, 1, 0
        %v820 = vsel %vm788, 1, 0
        %v821 = vsel %vm789, 1, 0
        %v822 = vsel %vm790, 1, 0
        %v823 = vsel %vm791, 1, 0
        %v824 = vsel %vm792, 1, 0
        %v825 = vsel %vm793, 1, 0
        %v826 = vsel %vm794, 1, 0
        %v827 = vsel %vm795, 1, 0
        %v828 = vsel %vm796, 1, 0
        %v829 = vsel %vm797, 1, 0
        %v830 = vsel %vm798, 1, 0
        %v831 = vsel %vm799, 1, 0
        %v832 = vsel %vm800, 1, 0
        %v833 = vsel %vm801, 1, 0
        %v834 = vsel %vm802, 1, 0
        %v835 = vsel %vm803, 1, 0
        %v836 = vsel %vm804, 1, 0
        %v837 = vsel %vm805, 1, 0
        %v838 = vsel %vm806, 1, 0
        %v839 = vsel %vm807, 1, 0
        %v840 = vsel %vm808, 1, 0
        %v841 = vsel %vm809, 1, 0
        %v842 = vsel %vm810, 1, 0
        %v843 = vcvt.s32.f32 %v811
        %v844 = vcvt.s32.f32 %v812
        %v845 = vcvt.s32.f32 %v813
        %v846 = vcvt.s32.f32 %v814
        %v847 = vcvt.s32.f32 %v815
        %v848 = vcvt.s32.f32 %v816
        %v849 = vcvt.s32.f32 %v817
        %v850 = vcvt.s32.f32 %v818
        %v851 = vcvt.s32.f32 %v819
        %v852 = vcvt.s32.f32 %v820
        %v853 = vcvt.s32.f32 %v821
        %v854 = vcvt.s32.f32 %v822
        %v855 = vcvt.s32.f32 %v823
        %v856 = vcvt.s32.f32 %v824
        %v857 = vcvt.s32.f32 %v825
        %v858 = vcvt.s32.f32 %v826
        %v859 = vcvt.s32.f32 %v827
        %v860 = vcvt.s32.f32 %v828
        %v861 = vcvt.s32.f32 %v829
        %v862 = vcvt.s32.f32 %v830
        %v863 = vcvt.s32.f32 %v831
        %v864 = vcvt.s32.f32 %v832
        %v865 = vcvt.s32.f32 %v833
        %v866 = vcvt.s32.f32 %v834
        %v867 = vcvt.s32.f32 %v835
        %v868 = vcvt.s32.f32 %v836
        %v869 = vcvt.s32.f32 %v837
        %v870 = vcvt.s32.f32 %v838
        %v871 = vcvt.s32.f32 %v839
        %v872 = vcvt.s32.f32 %v840
        %v873 = vcvt.s32.f32 %v841
        %v874 = vcvt.s32.f32 %v842
        %v875 = vadd.f32 %v843, %v844
        %v876 = vrot.slane %v875, 4
        %v877 = vadd.f32 %v875, %v876
        %v878 = vrot.slane %v877, 2
        %v879 = vadd.f32 %v877, %v878
        %v880 = vrot.slane %v879, 1
        %v881 = vadd.f32 %v879, %v880
        %v882 = vadd.f32 %v845, %v846
        %v883 = vrot.slane %v882, 4
        %v884 = vadd.f32 %v882, %v883
        %v885 = vrot.slane %v884, 2
        %v886 = vadd.f32 %v884, %v885
        %v887 = vrot.slane %v886, 1
        %v888 = vadd.f32 %v886, %v887
        %v889 = vadd.f32 %v847, %v848
        %v890 = vrot.slane %v889, 4
        %v891 = vadd.f32 %v889, %v890
        %v892 = vrot.slane %v891, 2
        %v893 = vadd.f32 %v891, %v892
        %v894 = vrot.slane %v893, 1
        %v895 = vadd.f32 %v893, %v894
        %v896 = vadd.f32 %v849, %v850
        %v897 = vrot.slane %v896, 4
        %v898 = vadd.f32 %v896, %v897
        %v899 = vrot.slane %v898, 2
        %v900 = vadd.f32 %v898, %v899
        %v901 = vrot.slane %v900, 1
        %v902 = vadd.f32 %v900, %v901
        %v903 = vadd.f32 %v851, %v852
        %v904 = vrot.slane %v903, 4
        %v905 = vadd.f32 %v903, %v904
        %v906 = vrot.slane %v905, 2
        %v907 = vadd.f32 %v905, %v906
        %v908 = vrot.slane %v907, 1
        %v909 = vadd.f32 %v907, %v908
        %v910 = vadd.f32 %v853, %v854
        %v911 = vrot.slane %v910, 4
        %v912 = vadd.f32 %v910, %v911
        %v913 = vrot.slane %v912, 2
        %v914 = vadd.f32 %v912, %v913
        %v915 = vrot.slane %v914, 1
        %v916 = vadd.f32 %v914, %v915
        %v917 = vadd.f32 %v855, %v856
        %v918 = vrot.slane %v917, 4
        %v919 = vadd.f32 %v917, %v918
        %v920 = vrot.slane %v919, 2
        %v921 = vadd.f32 %v919, %v920
        %v922 = vrot.slane %v921, 1
        %v923 = vadd.f32 %v921, %v922
        %v924 = vadd.f32 %v857, %v858
        %v925 = vrot.slane %v924, 4
        %v926 = vadd.f32 %v924, %v925
        %v927 = vrot.slane %v926, 2
        %v928 = vadd.f32 %v926, %v927
        %v929 = vrot.slane %v928, 1
        %v930 = vadd.f32 %v928, %v929
        %v931 = vadd.f32 %v859, %v860
        %v932 = vrot.slane %v931, 4
        %v933 = vadd.f32 %v931, %v932
        %v934 = vrot.slane %v933, 2
        %v935 = vadd.f32 %v933, %v934
        %v936 = vrot.slane %v935, 1
        %v937 = vadd.f32 %v935, %v936
        %v938 = vadd.f32 %v861, %v862
        %v939 = vrot.slane %v938, 4
        %v940 = vadd.f32 %v938, %v939
        %v941 = vrot.slane %v940, 2
        %v942 = vadd.f32 %v940, %v941
        %v943 = vrot.slane %v942, 1
        %v944 = vadd.f32 %v942, %v943
        %v945 = vadd.f32 %v863, %v864
        %v946 = vrot.slane %v945, 4
        %v947 = vadd.f32 %v945, %v946
        %v948 = vrot.slane %v947, 2
        %v949 = vadd.f32 %v947, %v948
        %v950 = vrot.slane %v949, 1
        %v951 = vadd.f32 %v949, %v950
        %v952 = vadd.f32 %v865, %v866
        %v953 = vrot.slane %v952, 4
        %v954 = vadd.f32 %v952, %v953
        %v955 = vrot.slane %v954, 2
        %v956 = vadd.f32 %v954, %v955
        %v957 = vrot.slane %v956, 1
        %v958 = vadd.f32 %v956, %v957
        %v959 = vadd.f32 %v867, %v868
        %v960 = vrot.slane %v959, 4
        %v961 = vadd.f32 %v959, %v960
        %v962 = vrot.slane %v961, 2
        %v963 = vadd.f32 %v961, %v962
        %v964 = vrot.slane %v963, 1
        %v965 = vadd.f32 %v963, %v964
        %v966 = vadd.f32 %v869, %v870
        %v967 = vrot.slane %v966, 4
        %v968 = vadd.f32 %v966, %v967
        %v969 = vrot.slane %v968, 2
        %v970 = vadd.f32 %v968, %v969
        %v971 = vrot.slane %v970, 1
        %v972 = vadd.f32 %v970, %v971
        %v973 = vadd.f32 %v871, %v872
        %v974 = vrot.slane %v973, 4
        %v975 = vadd.f32 %v973, %v974
        %v976 = vrot.slane %v975, 2
        %v977 = vadd.f32 %v975, %v976
        %v978 = vrot.slane %v977, 1
        %v979 = vadd.f32 %v977, %v978
        %v980 = vadd.f32 %v873, %v874
        %v981 = vrot.slane %v980, 4
        %v982 = vadd.f32 %v980, %v981
        %v983 = vrot.slane %v982, 2
        %v984 = vadd.f32 %v982, %v983
        %v985 = vrot.slane %v984, 1
        %v986 = vadd.f32 %v984, %v985
        %vm1003 = vcmask 1041409
        %v1004 = vsel %vm1003, %v888, %v881
        %vm1005 = vcmask 1042434
        %v1006 = vsel %vm1005, %v895, %v1004
        %vm1007 = vcmask 1043459
        %v1008 = vsel %vm1007, %v902, %v1006
        %vm1009 = vcmask 1044484
        %v1010 = vsel %vm1009, %v909, %v1008
        %vm1011 = vcmask 1045509
        %v1012 = vsel %vm1011, %v916, %v1010
        %vm1013 = vcmask 1046534
        %v1014 = vsel %vm1013, %v923, %v1012
        %vm1015 = vcmask 1047559
        %v1016 = vsel %vm1015, %v930, %v1014
        %v1017 = vsel %vm1003, %v944, %v937
        %v1018 = vsel %vm1005, %v951, %v1017
        %v1019 = vsel %vm1007, %v958, %v1018
        %v1020 = vsel %vm1009, %v965, %v1019
        %v1021 = vsel %vm1011, %v972, %v1020
        %v1022 = vsel %vm1013, %v979, %v1021
        %v1023 = vsel %vm1015, %v986, %v1022
        %1026 = vadd.xlane.f32.xlu0 %v1016
        %v1027 = vpop.xlane.xlu0 %1026
        %1028 = vadd.xlane.f32.xlu0 %v1023
        %v1029 = vpop.xlane.xlu0 %1028
        %v1032 = vlaneseq
        %v1033 = vshrl.u32 %v1032, 7
        %v1034 = vsub.s32 0, %v1033
        %v1035 = vrot.slane %v1027, %v1034
        %v1036 = vlaneseq
        %v1037 = vshrl.u32 %v1036, 7
        %v1038 = vsub.s32 1, %v1037
        %v1039 = vrot.slane %v1027, %v1038
        %v1040 = vlaneseq
        %v1041 = vshrl.u32 %v1040, 7
        %v1042 = vsub.s32 2, %v1041
        %v1043 = vrot.slane %v1027, %v1042
        %v1044 = vlaneseq
        %v1045 = vshrl.u32 %v1044, 7
        %v1046 = vsub.s32 3, %v1045
        %v1047 = vrot.slane %v1027, %v1046
        %v1048 = vlaneseq
        %v1049 = vshrl.u32 %v1048, 7
        %v1050 = vsub.s32 4, %v1049
        %v1051 = vrot.slane %v1027, %v1050
        %v1052 = vlaneseq
        %v1053 = vshrl.u32 %v1052, 7
        %v1054 = vsub.s32 5, %v1053
        %v1055 = vrot.slane %v1027, %v1054
        %v1056 = vlaneseq
        %v1057 = vshrl.u32 %v1056, 7
        %v1058 = vsub.s32 6, %v1057
        %v1059 = vrot.slane %v1027, %v1058
        %v1060 = vlaneseq
        %v1061 = vshrl.u32 %v1060, 7
        %v1062 = vsub.s32 7, %v1061
        %v1063 = vrot.slane %v1027, %v1062
        %v1064 = vlaneseq
        %v1065 = vshrl.u32 %v1064, 7
        %v1066 = vsub.s32 0, %v1065
        %v1067 = vrot.slane %v1029, %v1066
        %v1068 = vlaneseq
        %v1069 = vshrl.u32 %v1068, 7
        %v1070 = vsub.s32 1, %v1069
        %v1071 = vrot.slane %v1029, %v1070
        %v1072 = vlaneseq
        %v1073 = vshrl.u32 %v1072, 7
        %v1074 = vsub.s32 2, %v1073
        %v1075 = vrot.slane %v1029, %v1074
        %v1076 = vlaneseq
        %v1077 = vshrl.u32 %v1076, 7
        %v1078 = vsub.s32 3, %v1077
        %v1079 = vrot.slane %v1029, %v1078
        %v1080 = vlaneseq
        %v1081 = vshrl.u32 %v1080, 7
        %v1082 = vsub.s32 4, %v1081
        %v1083 = vrot.slane %v1029, %v1082
        %v1084 = vlaneseq
        %v1085 = vshrl.u32 %v1084, 7
        %v1086 = vsub.s32 5, %v1085
        %v1087 = vrot.slane %v1029, %v1086
        %v1088 = vlaneseq
        %v1089 = vshrl.u32 %v1088, 7
        %v1090 = vsub.s32 6, %v1089
        %v1091 = vrot.slane %v1029, %v1090
        %v1092 = vlaneseq
        %v1093 = vshrl.u32 %v1092, 7
        %v1094 = vsub.s32 7, %v1093
        %v1095 = vrot.slane %v1029, %v1094
        %v1112 = vlaneseq
        %v1113 = vshrl.u32 %v1112, 7
        %v1114 = vadd.s32 %v1113, 8
        %v1115 = vlaneseq
        %v1116 = vand.u32 %v1115, 127
        %v1117 = vmul.u32 %v1113, 128
        %v1118 = vmul.u32 %v1114, 128
        %v1119 = vadd.s32 %v1117, %v1116
        %v1120 = vadd.s32 %v1118, %v1116
        %v1121 = vsel %vm779, %v1119, 2048
        %v1122 = vsel %vm780, %v1120, 2048
        %v1123 = vsel %vm781, %v1119, 2048
        %v1124 = vsel %vm782, %v1120, 2048
        %v1125 = vsel %vm783, %v1119, 2048
        %v1126 = vsel %vm784, %v1120, 2048
        %v1127 = vsel %vm785, %v1119, 2048
        %v1128 = vsel %vm786, %v1120, 2048
        %v1129 = vsel %vm787, %v1119, 2048
        %v1130 = vsel %vm788, %v1120, 2048
        %v1131 = vsel %vm789, %v1119, 2048
        %v1132 = vsel %vm790, %v1120, 2048
        %v1133 = vsel %vm791, %v1119, 2048
        %v1134 = vsel %vm792, %v1120, 2048
        %v1135 = vsel %vm793, %v1119, 2048
        %v1136 = vsel %vm794, %v1120, 2048
        %v1137 = vsel %vm795, %v1119, 2048
        %v1138 = vsel %vm796, %v1120, 2048
        %v1139 = vsel %vm797, %v1119, 2048
        %v1140 = vsel %vm798, %v1120, 2048
        %v1141 = vsel %vm799, %v1119, 2048
        %v1142 = vsel %vm800, %v1120, 2048
        %v1143 = vsel %vm801, %v1119, 2048
        %v1144 = vsel %vm802, %v1120, 2048
        %v1145 = vsel %vm803, %v1119, 2048
        %v1146 = vsel %vm804, %v1120, 2048
        %v1147 = vsel %vm805, %v1119, 2048
        %v1148 = vsel %vm806, %v1120, 2048
        %v1149 = vsel %vm807, %v1119, 2048
        %v1150 = vsel %vm808, %v1120, 2048
        %v1151 = vsel %vm809, %v1119, 2048
        %v1152 = vsel %vm810, %v1120, 2048
        %vm1153 = vcmp.lt.s32.totalorder %v1121, %v1122
        %v1154 = vsel %vm1153, %v1121, %v1122
        %v1155 = vrot.slane %v1154, 4
        %vm1156 = vcmp.lt.s32.totalorder %v1154, %v1155
        %v1157 = vsel %vm1156, %v1154, %v1155
        %v1158 = vrot.slane %v1157, 2
        %vm1159 = vcmp.lt.s32.totalorder %v1157, %v1158
        %v1160 = vsel %vm1159, %v1157, %v1158
        %v1161 = vrot.slane %v1160, 1
        %vm1162 = vcmp.lt.s32.totalorder %v1160, %v1161
        %v1163 = vsel %vm1162, %v1160, %v1161
        %vm1164 = vcmp.lt.s32.totalorder %v1123, %v1124
        %v1165 = vsel %vm1164, %v1123, %v1124
        %v1166 = vrot.slane %v1165, 4
        %vm1167 = vcmp.lt.s32.totalorder %v1165, %v1166
        %v1168 = vsel %vm1167, %v1165, %v1166
        %v1169 = vrot.slane %v1168, 2
        %vm1170 = vcmp.lt.s32.totalorder %v1168, %v1169
        %v1171 = vsel %vm1170, %v1168, %v1169
        %v1172 = vrot.slane %v1171, 1
        %vm1173 = vcmp.lt.s32.totalorder %v1171, %v1172
        %v1174 = vsel %vm1173, %v1171, %v1172
        %vm1175 = vcmp.lt.s32.totalorder %v1125, %v1126
        %v1176 = vsel %vm1175, %v1125, %v1126
        %v1177 = vrot.slane %v1176, 4
        %vm1178 = vcmp.lt.s32.totalorder %v1176, %v1177
        %v1179 = vsel %vm1178, %v1176, %v1177
        %v1180 = vrot.slane %v1179, 2
        %vm1181 = vcmp.lt.s32.totalorder %v1179, %v1180
        %v1182 = vsel %vm1181, %v1179, %v1180
        %v1183 = vrot.slane %v1182, 1
        %vm1184 = vcmp.lt.s32.totalorder %v1182, %v1183
        %v1185 = vsel %vm1184, %v1182, %v1183
        %vm1186 = vcmp.lt.s32.totalorder %v1127, %v1128
        %v1187 = vsel %vm1186, %v1127, %v1128
        %v1188 = vrot.slane %v1187, 4
        %vm1189 = vcmp.lt.s32.totalorder %v1187, %v1188
        %v1190 = vsel %vm1189, %v1187, %v1188
        %v1191 = vrot.slane %v1190, 2
        %vm1192 = vcmp.lt.s32.totalorder %v1190, %v1191
        %v1193 = vsel %vm1192, %v1190, %v1191
        %v1194 = vrot.slane %v1193, 1
        %vm1195 = vcmp.lt.s32.totalorder %v1193, %v1194
        %v1196 = vsel %vm1195, %v1193, %v1194
        %vm1197 = vcmp.lt.s32.totalorder %v1129, %v1130
        %v1198 = vsel %vm1197, %v1129, %v1130
        %v1199 = vrot.slane %v1198, 4
        %vm1200 = vcmp.lt.s32.totalorder %v1198, %v1199
        %v1201 = vsel %vm1200, %v1198, %v1199
        %v1202 = vrot.slane %v1201, 2
        %vm1203 = vcmp.lt.s32.totalorder %v1201, %v1202
        %v1204 = vsel %vm1203, %v1201, %v1202
        %v1205 = vrot.slane %v1204, 1
        %vm1206 = vcmp.lt.s32.totalorder %v1204, %v1205
        %v1207 = vsel %vm1206, %v1204, %v1205
        %vm1208 = vcmp.lt.s32.totalorder %v1131, %v1132
        %v1209 = vsel %vm1208, %v1131, %v1132
        %v1210 = vrot.slane %v1209, 4
        %vm1211 = vcmp.lt.s32.totalorder %v1209, %v1210
        %v1212 = vsel %vm1211, %v1209, %v1210
        %v1213 = vrot.slane %v1212, 2
        %vm1214 = vcmp.lt.s32.totalorder %v1212, %v1213
        %v1215 = vsel %vm1214, %v1212, %v1213
        %v1216 = vrot.slane %v1215, 1
        %vm1217 = vcmp.lt.s32.totalorder %v1215, %v1216
        %v1218 = vsel %vm1217, %v1215, %v1216
        %vm1219 = vcmp.lt.s32.totalorder %v1133, %v1134
        %v1220 = vsel %vm1219, %v1133, %v1134
        %v1221 = vrot.slane %v1220, 4
        %vm1222 = vcmp.lt.s32.totalorder %v1220, %v1221
        %v1223 = vsel %vm1222, %v1220, %v1221
        %v1224 = vrot.slane %v1223, 2
        %vm1225 = vcmp.lt.s32.totalorder %v1223, %v1224
        %v1226 = vsel %vm1225, %v1223, %v1224
        %v1227 = vrot.slane %v1226, 1
        %vm1228 = vcmp.lt.s32.totalorder %v1226, %v1227
        %v1229 = vsel %vm1228, %v1226, %v1227
        %vm1230 = vcmp.lt.s32.totalorder %v1135, %v1136
        %v1231 = vsel %vm1230, %v1135, %v1136
        %v1232 = vrot.slane %v1231, 4
        %vm1233 = vcmp.lt.s32.totalorder %v1231, %v1232
        %v1234 = vsel %vm1233, %v1231, %v1232
        %v1235 = vrot.slane %v1234, 2
        %vm1236 = vcmp.lt.s32.totalorder %v1234, %v1235
        %v1237 = vsel %vm1236, %v1234, %v1235
        %v1238 = vrot.slane %v1237, 1
        %vm1239 = vcmp.lt.s32.totalorder %v1237, %v1238
        %v1240 = vsel %vm1239, %v1237, %v1238
        %vm1241 = vcmp.lt.s32.totalorder %v1137, %v1138
        %v1242 = vsel %vm1241, %v1137, %v1138
        %v1243 = vrot.slane %v1242, 4
        %vm1244 = vcmp.lt.s32.totalorder %v1242, %v1243
        %v1245 = vsel %vm1244, %v1242, %v1243
        %v1246 = vrot.slane %v1245, 2
        %vm1247 = vcmp.lt.s32.totalorder %v1245, %v1246
        %v1248 = vsel %vm1247, %v1245, %v1246
        %v1249 = vrot.slane %v1248, 1
        %vm1250 = vcmp.lt.s32.totalorder %v1248, %v1249
        %v1251 = vsel %vm1250, %v1248, %v1249
        %vm1252 = vcmp.lt.s32.totalorder %v1139, %v1140
        %v1253 = vsel %vm1252, %v1139, %v1140
        %v1254 = vrot.slane %v1253, 4
        %vm1255 = vcmp.lt.s32.totalorder %v1253, %v1254
        %v1256 = vsel %vm1255, %v1253, %v1254
        %v1257 = vrot.slane %v1256, 2
        %vm1258 = vcmp.lt.s32.totalorder %v1256, %v1257
        %v1259 = vsel %vm1258, %v1256, %v1257
        %v1260 = vrot.slane %v1259, 1
        %vm1261 = vcmp.lt.s32.totalorder %v1259, %v1260
        %v1262 = vsel %vm1261, %v1259, %v1260
        %vm1263 = vcmp.lt.s32.totalorder %v1141, %v1142
        %v1264 = vsel %vm1263, %v1141, %v1142
        %v1265 = vrot.slane %v1264, 4
        %vm1266 = vcmp.lt.s32.totalorder %v1264, %v1265
        %v1267 = vsel %vm1266, %v1264, %v1265
        %v1268 = vrot.slane %v1267, 2
        %vm1269 = vcmp.lt.s32.totalorder %v1267, %v1268
        %v1270 = vsel %vm1269, %v1267, %v1268
        %v1271 = vrot.slane %v1270, 1
        %vm1272 = vcmp.lt.s32.totalorder %v1270, %v1271
        %v1273 = vsel %vm1272, %v1270, %v1271
        %vm1274 = vcmp.lt.s32.totalorder %v1143, %v1144
        %v1275 = vsel %vm1274, %v1143, %v1144
        %v1276 = vrot.slane %v1275, 4
        %vm1277 = vcmp.lt.s32.totalorder %v1275, %v1276
        %v1278 = vsel %vm1277, %v1275, %v1276
        %v1279 = vrot.slane %v1278, 2
        %vm1280 = vcmp.lt.s32.totalorder %v1278, %v1279
        %v1281 = vsel %vm1280, %v1278, %v1279
        %v1282 = vrot.slane %v1281, 1
        %vm1283 = vcmp.lt.s32.totalorder %v1281, %v1282
        %v1284 = vsel %vm1283, %v1281, %v1282
        %vm1285 = vcmp.lt.s32.totalorder %v1145, %v1146
        %v1286 = vsel %vm1285, %v1145, %v1146
        %v1287 = vrot.slane %v1286, 4
        %vm1288 = vcmp.lt.s32.totalorder %v1286, %v1287
        %v1289 = vsel %vm1288, %v1286, %v1287
        %v1290 = vrot.slane %v1289, 2
        %vm1291 = vcmp.lt.s32.totalorder %v1289, %v1290
        %v1292 = vsel %vm1291, %v1289, %v1290
        %v1293 = vrot.slane %v1292, 1
        %vm1294 = vcmp.lt.s32.totalorder %v1292, %v1293
        %v1295 = vsel %vm1294, %v1292, %v1293
        %vm1296 = vcmp.lt.s32.totalorder %v1147, %v1148
        %v1297 = vsel %vm1296, %v1147, %v1148
        %v1298 = vrot.slane %v1297, 4
        %vm1299 = vcmp.lt.s32.totalorder %v1297, %v1298
        %v1300 = vsel %vm1299, %v1297, %v1298
        %v1301 = vrot.slane %v1300, 2
        %vm1302 = vcmp.lt.s32.totalorder %v1300, %v1301
        %v1303 = vsel %vm1302, %v1300, %v1301
        %v1304 = vrot.slane %v1303, 1
        %vm1305 = vcmp.lt.s32.totalorder %v1303, %v1304
        %v1306 = vsel %vm1305, %v1303, %v1304
        %vm1307 = vcmp.lt.s32.totalorder %v1149, %v1150
        %v1308 = vsel %vm1307, %v1149, %v1150
        %v1309 = vrot.slane %v1308, 4
        %vm1310 = vcmp.lt.s32.totalorder %v1308, %v1309
        %v1311 = vsel %vm1310, %v1308, %v1309
        %v1312 = vrot.slane %v1311, 2
        %vm1313 = vcmp.lt.s32.totalorder %v1311, %v1312
        %v1314 = vsel %vm1313, %v1311, %v1312
        %v1315 = vrot.slane %v1314, 1
        %vm1316 = vcmp.lt.s32.totalorder %v1314, %v1315
        %v1317 = vsel %vm1316, %v1314, %v1315
        %vm1318 = vcmp.lt.s32.totalorder %v1151, %v1152
        %v1319 = vsel %vm1318, %v1151, %v1152
        %v1320 = vrot.slane %v1319, 4
        %vm1321 = vcmp.lt.s32.totalorder %v1319, %v1320
        %v1322 = vsel %vm1321, %v1319, %v1320
        %v1323 = vrot.slane %v1322, 2
        %vm1324 = vcmp.lt.s32.totalorder %v1322, %v1323
        %v1325 = vsel %vm1324, %v1322, %v1323
        %v1326 = vrot.slane %v1325, 1
        %vm1327 = vcmp.lt.s32.totalorder %v1325, %v1326
        %v1328 = vsel %vm1327, %v1325, %v1326
        %v1329 = vsel %vm1003, %v1174, %v1163
        %v1330 = vsel %vm1005, %v1185, %v1329
        %v1331 = vsel %vm1007, %v1196, %v1330
        %v1332 = vsel %vm1009, %v1207, %v1331
        %v1333 = vsel %vm1011, %v1218, %v1332
        %v1334 = vsel %vm1013, %v1229, %v1333
        %v1335 = vsel %vm1015, %v1240, %v1334
        %v1336 = vsel %vm1003, %v1262, %v1251
        %v1337 = vsel %vm1005, %v1273, %v1336
        %v1338 = vsel %vm1007, %v1284, %v1337
        %v1339 = vsel %vm1009, %v1295, %v1338
        %v1340 = vsel %vm1011, %v1306, %v1339
        %v1341 = vsel %vm1013, %v1317, %v1340
        %v1342 = vsel %vm1015, %v1328, %v1341
        %v1343 = vand.u32 %v1335, 65535
        %v1344 = vshra.s32 %v1335, 16
        %v1345 = vcvt.s32.f32 %v1343
        %v1346 = vcvt.s32.f32 %v1344
        %1347 = vmin.xlane.f32.xlu0 %v1346
        %v1348 = vpop.xlane.xlu0 %1347
        %vm1349 = vcmp.eq.f32.partialorder %v1346, %v1348
        %v1350 = vsel %vm1349, %v1345, inf
        %1351 = vmin.xlane.f32.xlu0 %v1350
        %v1352 = vpop.xlane.xlu0 %1351
        %v1353 = vcvt.f32.s32 %v1352
        %v1354 = vcvt.f32.s32 %v1348
        %v1355 = vshll.u32 %v1354, 16
        %v1356 = vadd.s32 %v1355, %v1353
        %v1357 = vand.u32 %v1342, 65535
        %v1358 = vshra.s32 %v1342, 16
        %v1359 = vcvt.s32.f32 %v1357
        %v1360 = vcvt.s32.f32 %v1358
        %1361 = vmin.xlane.f32.xlu0 %v1360
        %v1362 = vpop.xlane.xlu0 %1361
        %vm1363 = vcmp.eq.f32.partialorder %v1360, %v1362
        %v1364 = vsel %vm1363, %v1359, inf
        %1365 = vmin.xlane.f32.xlu0 %v1364
        %v1366 = vpop.xlane.xlu0 %1365
        %v1367 = vcvt.f32.s32 %v1366
        %v1368 = vcvt.f32.s32 %v1362
        %v1369 = vshll.u32 %v1368, 16
        %v1370 = vadd.s32 %v1369, %v1367
        %v1371 = vlaneseq
        %v1372 = vshrl.u32 %v1371, 7
        %v1373 = vsub.s32 0, %v1372
        %v1374 = vrot.slane %v1356, %v1373
        %v1375 = vlaneseq
        %v1376 = vshrl.u32 %v1375, 7
        %v1377 = vsub.s32 1, %v1376
        %v1378 = vrot.slane %v1356, %v1377
        %v1379 = vlaneseq
        %v1380 = vshrl.u32 %v1379, 7
        %v1381 = vsub.s32 2, %v1380
        %v1382 = vrot.slane %v1356, %v1381
        %v1383 = vlaneseq
        %v1384 = vshrl.u32 %v1383, 7
        %v1385 = vsub.s32 3, %v1384
        %v1386 = vrot.slane %v1356, %v1385
        %v1387 = vlaneseq
        %v1388 = vshrl.u32 %v1387, 7
        %v1389 = vsub.s32 4, %v1388
        %v1390 = vrot.slane %v1356, %v1389
        %v1391 = vlaneseq
        %v1392 = vshrl.u32 %v1391, 7
        %v1393 = vsub.s32 5, %v1392
        %v1394 = vrot.slane %v1356, %v1393
        %v1395 = vlaneseq
        %v1396 = vshrl.u32 %v1395, 7
        %v1397 = vsub.s32 6, %v1396
        %v1398 = vrot.slane %v1356, %v1397
        %v1399 = vlaneseq
        %v1400 = vshrl.u32 %v1399, 7
        %v1401 = vsub.s32 7, %v1400
        %v1402 = vrot.slane %v1356, %v1401
        %v1403 = vlaneseq
        %v1404 = vshrl.u32 %v1403, 7
        %v1405 = vsub.s32 0, %v1404
        %v1406 = vrot.slane %v1370, %v1405
        %v1407 = vlaneseq
        %v1408 = vshrl.u32 %v1407, 7
        %v1409 = vsub.s32 1, %v1408
        %v1410 = vrot.slane %v1370, %v1409
        %v1411 = vlaneseq
        %v1412 = vshrl.u32 %v1411, 7
        %v1413 = vsub.s32 2, %v1412
        %v1414 = vrot.slane %v1370, %v1413
        %v1415 = vlaneseq
        %v1416 = vshrl.u32 %v1415, 7
        %v1417 = vsub.s32 3, %v1416
        %v1418 = vrot.slane %v1370, %v1417
        %v1419 = vlaneseq
        %v1420 = vshrl.u32 %v1419, 7
        %v1421 = vsub.s32 4, %v1420
        %v1422 = vrot.slane %v1370, %v1421
        %v1423 = vlaneseq
        %v1424 = vshrl.u32 %v1423, 7
        %v1425 = vsub.s32 5, %v1424
        %v1426 = vrot.slane %v1370, %v1425
        %v1427 = vlaneseq
        %v1428 = vshrl.u32 %v1427, 7
        %v1429 = vsub.s32 6, %v1428
        %v1430 = vrot.slane %v1370, %v1429
        %v1431 = vlaneseq
        %v1432 = vshrl.u32 %v1431, 7
        %v1433 = vsub.s32 7, %v1432
        %v1434 = vrot.slane %v1370, %v1433
        %vm1435 = vcmp.eq.s32.totalorder %v1119, %v1374
        %vm1436 = vcmp.eq.s32.totalorder %v1120, %v1374
        %vm1437 = vcmp.eq.s32.totalorder %v1119, %v1378
        %vm1438 = vcmp.eq.s32.totalorder %v1120, %v1378
        %vm1439 = vcmp.eq.s32.totalorder %v1119, %v1382
        %vm1440 = vcmp.eq.s32.totalorder %v1120, %v1382
        %vm1441 = vcmp.eq.s32.totalorder %v1119, %v1386
        %vm1442 = vcmp.eq.s32.totalorder %v1120, %v1386
        %vm1443 = vcmp.eq.s32.totalorder %v1119, %v1390
        %vm1444 = vcmp.eq.s32.totalorder %v1120, %v1390
        %vm1445 = vcmp.eq.s32.totalorder %v1119, %v1394
        %vm1446 = vcmp.eq.s32.totalorder %v1120, %v1394
        %vm1447 = vcmp.eq.s32.totalorder %v1119, %v1398
        %vm1448 = vcmp.eq.s32.totalorder %v1120, %v1398
        %vm1449 = vcmp.eq.s32.totalorder %v1119, %v1402
        %vm1450 = vcmp.eq.s32.totalorder %v1120, %v1402
        %vm1451 = vcmp.eq.s32.totalorder %v1119, %v1406
        %vm1452 = vcmp.eq.s32.totalorder %v1120, %v1406
        %vm1453 = vcmp.eq.s32.totalorder %v1119, %v1410
        %vm1454 = vcmp.eq.s32.totalorder %v1120, %v1410
        %vm1455 = vcmp.eq.s32.totalorder %v1119, %v1414
        %vm1456 = vcmp.eq.s32.totalorder %v1120, %v1414
        %vm1457 = vcmp.eq.s32.totalorder %v1119, %v1418
        %vm1458 = vcmp.eq.s32.totalorder %v1120, %v1418
        %vm1459 = vcmp.eq.s32.totalorder %v1119, %v1422
        %vm1460 = vcmp.eq.s32.totalorder %v1120, %v1422
        %vm1461 = vcmp.eq.s32.totalorder %v1119, %v1426
        %vm1462 = vcmp.eq.s32.totalorder %v1120, %v1426
        %vm1463 = vcmp.eq.s32.totalorder %v1119, %v1430
        %vm1464 = vcmp.eq.s32.totalorder %v1120, %v1430
        %vm1465 = vcmp.eq.s32.totalorder %v1119, %v1434
        %vm1466 = vcmp.eq.s32.totalorder %v1120, %v1434
        %v1467 = vsel %vm1435, 1, 0
        %v1468 = vsel %vm1436, 1, 0
        %v1469 = vsel %vm1437, 1, 0
        %v1470 = vsel %vm1438, 1, 0
        %v1471 = vsel %vm1439, 1, 0
        %v1472 = vsel %vm1440, 1, 0
        %v1473 = vsel %vm1441, 1, 0
        %v1474 = vsel %vm1442, 1, 0
        %v1475 = vsel %vm1443, 1, 0
        %v1476 = vsel %vm1444, 1, 0
        %v1477 = vsel %vm1445, 1, 0
        %v1478 = vsel %vm1446, 1, 0
        %v1479 = vsel %vm1447, 1, 0
        %v1480 = vsel %vm1448, 1, 0
        %v1481 = vsel %vm1449, 1, 0
        %v1482 = vsel %vm1450, 1, 0
        %v1483 = vsel %vm1451, 1, 0
        %v1484 = vsel %vm1452, 1, 0
        %v1485 = vsel %vm1453, 1, 0
        %v1486 = vsel %vm1454, 1, 0
        %v1487 = vsel %vm1455, 1, 0
        %v1488 = vsel %vm1456, 1, 0
        %v1489 = vsel %vm1457, 1, 0
        %v1490 = vsel %vm1458, 1, 0
        %v1491 = vsel %vm1459, 1, 0
        %v1492 = vsel %vm1460, 1, 0
        %v1493 = vsel %vm1461, 1, 0
        %v1494 = vsel %vm1462, 1, 0
        %v1495 = vsel %vm1463, 1, 0
        %v1496 = vsel %vm1464, 1, 0
        %v1497 = vsel %vm1465, 1, 0
        %v1498 = vsel %vm1466, 1, 0
        %v1499 = vcvt.s32.f32 %v1467
        %v1500 = vcvt.s32.f32 %v1468
        %v1501 = vcvt.s32.f32 %v1469
        %v1502 = vcvt.s32.f32 %v1470
        %v1503 = vcvt.s32.f32 %v1471
        %v1504 = vcvt.s32.f32 %v1472
        %v1505 = vcvt.s32.f32 %v1473
        %v1506 = vcvt.s32.f32 %v1474
        %v1507 = vcvt.s32.f32 %v1475
        %v1508 = vcvt.s32.f32 %v1476
        %v1509 = vcvt.s32.f32 %v1477
        %v1510 = vcvt.s32.f32 %v1478
        %v1511 = vcvt.s32.f32 %v1479
        %v1512 = vcvt.s32.f32 %v1480
        %v1513 = vcvt.s32.f32 %v1481
        %v1514 = vcvt.s32.f32 %v1482
        %v1515 = vcvt.s32.f32 %v1483
        %v1516 = vcvt.s32.f32 %v1484
        %v1517 = vcvt.s32.f32 %v1485
        %v1518 = vcvt.s32.f32 %v1486
        %v1519 = vcvt.s32.f32 %v1487
        %v1520 = vcvt.s32.f32 %v1488
        %v1521 = vcvt.s32.f32 %v1489
        %v1522 = vcvt.s32.f32 %v1490
        %v1523 = vcvt.s32.f32 %v1491
        %v1524 = vcvt.s32.f32 %v1492
        %v1525 = vcvt.s32.f32 %v1493
        %v1526 = vcvt.s32.f32 %v1494
        %v1527 = vcvt.s32.f32 %v1495
        %v1528 = vcvt.s32.f32 %v1496
        %v1529 = vcvt.s32.f32 %v1497
        %v1530 = vcvt.s32.f32 %v1498
        %vm1531 = vcmp.gt.f32.partialorder %v1035, 1.0
        %vm1532 = vcmp.gt.f32.partialorder %v1039, 1.0
        %vm1533 = vcmp.gt.f32.partialorder %v1043, 1.0
        %vm1534 = vcmp.gt.f32.partialorder %v1047, 1.0
        %vm1535 = vcmp.gt.f32.partialorder %v1051, 1.0
        %vm1536 = vcmp.gt.f32.partialorder %v1055, 1.0
        %vm1537 = vcmp.gt.f32.partialorder %v1059, 1.0
        %vm1538 = vcmp.gt.f32.partialorder %v1063, 1.0
        %vm1539 = vcmp.gt.f32.partialorder %v1067, 1.0
        %vm1540 = vcmp.gt.f32.partialorder %v1071, 1.0
        %vm1541 = vcmp.gt.f32.partialorder %v1075, 1.0
        %vm1542 = vcmp.gt.f32.partialorder %v1079, 1.0
        %vm1543 = vcmp.gt.f32.partialorder %v1083, 1.0
        %vm1544 = vcmp.gt.f32.partialorder %v1087, 1.0
        %vm1545 = vcmp.gt.f32.partialorder %v1091, 1.0
        %vm1546 = vcmp.gt.f32.partialorder %v1095, 1.0
        %v1547 = vsel %vm1531, 1, 0
        %v1548 = vsel %vm1532, 1, 0
        %v1549 = vsel %vm1533, 1, 0
        %v1550 = vsel %vm1534, 1, 0
        %v1551 = vsel %vm1535, 1, 0
        %v1552 = vsel %vm1536, 1, 0
        %v1553 = vsel %vm1537, 1, 0
        %v1554 = vsel %vm1538, 1, 0
        %v1555 = vsel %vm1539, 1, 0
        %v1556 = vsel %vm1540, 1, 0
        %v1557 = vsel %vm1541, 1, 0
        %v1558 = vsel %vm1542, 1, 0
        %v1559 = vsel %vm1543, 1, 0
        %v1560 = vsel %vm1544, 1, 0
        %v1561 = vsel %vm1545, 1, 0
        %v1562 = vsel %vm1546, 1, 0
        %vm1563 = vcmp.eq.s32.totalorder %v1547, 1
        %vm1564 = vcmp.eq.s32.totalorder %v1548, 1
        %vm1565 = vcmp.eq.s32.totalorder %v1549, 1
        %vm1566 = vcmp.eq.s32.totalorder %v1550, 1
        %vm1567 = vcmp.eq.s32.totalorder %v1551, 1
        %vm1568 = vcmp.eq.s32.totalorder %v1552, 1
        %vm1569 = vcmp.eq.s32.totalorder %v1553, 1
        %vm1570 = vcmp.eq.s32.totalorder %v1554, 1
        %vm1571 = vcmp.eq.s32.totalorder %v1555, 1
        %vm1572 = vcmp.eq.s32.totalorder %v1556, 1
        %vm1573 = vcmp.eq.s32.totalorder %v1557, 1
        %vm1574 = vcmp.eq.s32.totalorder %v1558, 1
        %vm1575 = vcmp.eq.s32.totalorder %v1559, 1
        %vm1576 = vcmp.eq.s32.totalorder %v1560, 1
        %vm1577 = vcmp.eq.s32.totalorder %v1561, 1
        %vm1578 = vcmp.eq.s32.totalorder %v1562, 1
        %v1579 = vsel %vm1563, %v1499, %v843
        %v1580 = vsel %vm1563, %v1500, %v844
        %v1581 = vsel %vm1564, %v1501, %v845
        %v1582 = vsel %vm1564, %v1502, %v846
        %v1583 = vsel %vm1565, %v1503, %v847
        %v1584 = vsel %vm1565, %v1504, %v848
        %v1585 = vsel %vm1566, %v1505, %v849
        %v1586 = vsel %vm1566, %v1506, %v850
        %v1587 = vsel %vm1567, %v1507, %v851
        %v1588 = vsel %vm1567, %v1508, %v852
        %v1589 = vsel %vm1568, %v1509, %v853
        %v1590 = vsel %vm1568, %v1510, %v854
        %v1591 = vsel %vm1569, %v1511, %v855
        %v1592 = vsel %vm1569, %v1512, %v856
        %v1593 = vsel %vm1570, %v1513, %v857
        %v1594 = vsel %vm1570, %v1514, %v858
        %v1595 = vsel %vm1571, %v1515, %v859
        %v1596 = vsel %vm1571, %v1516, %v860
        %v1597 = vsel %vm1572, %v1517, %v861
        %v1598 = vsel %vm1572, %v1518, %v862
        %v1599 = vsel %vm1573, %v1519, %v863
        %v1600 = vsel %vm1573, %v1520, %v864
        %v1601 = vsel %vm1574, %v1521, %v865
        %v1602 = vsel %vm1574, %v1522, %v866
        %v1603 = vsel %vm1575, %v1523, %v867
        %v1604 = vsel %vm1575, %v1524, %v868
        %v1605 = vsel %vm1576, %v1525, %v869
        %v1606 = vsel %vm1576, %v1526, %v870
        %v1607 = vsel %vm1577, %v1527, %v871
        %v1608 = vsel %vm1577, %v1528, %v872
        %v1609 = vsel %vm1578, %v1529, %v873
        %v1610 = vsel %vm1578, %v1530, %v874
        %1611 = vst [vmem:[%s166] sm:$0xff] %v1579
        %1612 = vst [vmem:[%s166 + $0x8] sm:$0xff] %v1580
        %1613 = vst [vmem:[%s166 + $0x10] sm:$0xff] %v1581
        %1614 = vst [vmem:[%s166 + $0x18] sm:$0xff] %v1582
        %1615 = vst [vmem:[%s166 + $0x20] sm:$0xff] %v1583
        %1616 = vst [vmem:[%s166 + $0x28] sm:$0xff] %v1584
        %1617 = vst [vmem:[%s166 + $0x30] sm:$0xff] %v1585
        %1618 = vst [vmem:[%s166 + $0x38] sm:$0xff] %v1586
        %1619 = vst [vmem:[%s166 + $0x40] sm:$0xff] %v1587
        %1620 = vst [vmem:[%s166 + $0x48] sm:$0xff] %v1588
        %1621 = vst [vmem:[%s166 + $0x50] sm:$0xff] %v1589
        %1622 = vst [vmem:[%s166 + $0x58] sm:$0xff] %v1590
        %1623 = vst [vmem:[%s166 + $0x60] sm:$0xff] %v1591
        %1624 = vst [vmem:[%s166 + $0x68] sm:$0xff] %v1592
        %1625 = vst [vmem:[%s166 + $0x70] sm:$0xff] %v1593
        %1626 = vst [vmem:[%s166 + $0x78] sm:$0xff] %v1594
        %1627 = vst [vmem:[%s166 + $0x80] sm:$0xff] %v1595
        %1628 = vst [vmem:[%s166 + $0x88] sm:$0xff] %v1596
        %1629 = vst [vmem:[%s166 + $0x90] sm:$0xff] %v1597
        %1630 = vst [vmem:[%s166 + $0x98] sm:$0xff] %v1598
        %1631 = vst [vmem:[%s166 + $0xa0] sm:$0xff] %v1599
        %1632 = vst [vmem:[%s166 + $0xa8] sm:$0xff] %v1600
        %1633 = vst [vmem:[%s166 + $0xb0] sm:$0xff] %v1601
        %1634 = vst [vmem:[%s166 + $0xb8] sm:$0xff] %v1602
        %1635 = vst [vmem:[%s166 + $0xc0] sm:$0xff] %v1603
        %1636 = vst [vmem:[%s166 + $0xc8] sm:$0xff] %v1604
        %1637 = vst [vmem:[%s166 + $0xd0] sm:$0xff] %v1605
        %1638 = vst [vmem:[%s166 + $0xd8] sm:$0xff] %v1606
        %1639 = vst [vmem:[%s166 + $0xe0] sm:$0xff] %v1607
        %1640 = vst [vmem:[%s166 + $0xe8] sm:$0xff] %v1608
        %1641 = vst [vmem:[%s166 + $0xf0] sm:$0xff] %v1609
        %1642 = vst [vmem:[%s166 + $0xf8] sm:$0xff] %v1610
        %s1643 = sand.u32 %s93, 1
        %s1644 = scalar_lea.sflag [#allocation3], %s1643
        %s1645 = sand.u32 %s93, 1
        %s1646 = smul.addr %s1645, 256
        %s1647 = scalar_lea.vmem [#allocation2], %s1646
        // Predicated region
        $region33: #{tpu_custom_call.1} parent=31 // pred_check
          %p1648 = pneg %p103
        $region34: #{tpu_custom_call.1} parent=31 // pred_check_branch
          %1650 = sbr.rel (%p1648) target = $region36
        $region35: #{tpu_custom_call.1} parent=31 // pred_region
          %s1651 = smul.u32 16, %s17
          %s1653 = ssub.s32 4096, 4096
          %1654 = vsyncadd %s1644, %s1653
          %s1655 = smul.addr %s1651, 2
          %s1656 = smul.addr %s1655, 128
          %s1657 = scalar_lea.hbm %s3, %s1656
          %s1658 = sshll.u32 %s1647, 4
          %s1659 = int_to_ptr.vmem [resolvable:$true] %s1658
          %1664 = dma.vmem_to_hbm [thread:$0]  %s1659, 4096, %s1657, %s1644, 128, 128, 8
        $region36: #{tpu_custom_call.1} parent=31 // pred_fallthru
          _
      $region32: #{tpu_custom_call.1} parent=5 // pred_fallthru
        _
      %p1665 = scmp.le.s32.totalorder 2, %s12
      // Predicated region
      $region37: #{tpu_custom_call.1} parent=5 // pred_check
        %p1666 = pneg %p1665
      $region38: #{tpu_custom_call.1} parent=5 // pred_check_branch
        %1668 = sbr.rel (%p1666) target = $region40
      $region39: #{tpu_custom_call.1} parent=5 // pred_region
        %s1669 = ssub.s32 %s12, 2
        // Predicated region
        $region41: #{tpu_custom_call.1} parent=39 // pred_check
          %p1670 = pneg %p109
        $region42: #{tpu_custom_call.1} parent=39 // pred_check_branch
          %1672 = sbr.rel (%p1670) target = $region44
        $region43: #{tpu_custom_call.1} parent=39 // pred_region
          %s1673 = sand.u32 %s94, 1
          %s1674 = scalar_lea.sflag [#allocation3], %s1673
          %s1675 = sand.u32 %s94, 1
          %s1676 = smul.addr %s1675, 256
          %s1677 = scalar_lea.vmem [#allocation2], %s1676
          %1678 = dma.done %s1674, 4096
        $region44: #{tpu_custom_call.1} parent=39 // pred_fallthru
          _
      $region40: #{tpu_custom_call.1} parent=5 // pred_fallthru
        _
    $region6: #{tpu_custom_call.1} parent=1 // loop_footer
      %s16 = sadd.s32 1, %s12
    $region7: #{tpu_custom_call.1} parent=1 // loop_footer_branch
      %11 = sbr.rel target = $region3
    $region8: #{tpu_custom_call.1} parent=1 // loop_exit
      _
    %1679 = vsyncpa [#allocation3], 1
    %s1680 = scalar_lea.sflag [#allocation3], 1
    %1681 = vsyncpa %s1680, 1

</llo_original>
